<compile_context>
chip_gen: v7x
topology: tpu7x:2x2x1
jax: 0.10.0
libtpu: 0.0.40
codegen_flags: <defaults>
</compile_context>

<pallas_src>
import functools
import math

import jax
import jax.numpy as jnp
import numpy as np
from jax.experimental import pallas as pl
from jax.experimental.pallas import tpu as pltpu


# ----------------------------------------------------------------------------
# Pallas kernel: one batch tile (B_TILE elements) per grid step.
# ----------------------------------------------------------------------------
def _attnpool_kernel(x_ref,           # (Bt, C, T)   channel-major input tokens
                     poshw_ref,       # (T, C)       positional embedding, spatial
                     mask_ref,        # (C, H)       block-diagonal head mask
                     maskt_ref,       # (H, C)       its transpose
                     wq_ref, dq_ref,  # (C, C), (1, C)  scale pre-folded; dq = pos0@Wq_s + bq_s
                     wk_ref, bk_ref, dk_ref,  # (C, C), (1, C), (1, C)  dk = (pos0-mean(pos_hw))@Wk
                     wv_ref, bv_ref, dv_ref,  # (C, C), (1, C), (1, C)
                     wc_ref, bc_ref,  # (C, O), (1, O)
                     out_ref,         # (Bt, O)
                     *, b_tile, num_heads):
    f32 = jnp.float32
    c = x_ref.shape[1]
    t = x_ref.shape[2]

    x_cm = x_ref[...]                                              # (Bt, C, T)

    # ---- pooled-token content: mean over spatial positions, taken directly on
    #      the channel-major block (lane-dim reduction, f32 accumulate).
    mean_x = jnp.mean(x_cm.astype(f32), axis=2)                    # (Bt, C)

    # ---- channel-major -> token-major relayout in VMEM (replaces any HBM
    #      transpose).  Per-batch 2D transposes only (XLU, overlapped).
    rows = [x_cm[b].T for b in range(b_tile)]                      # Bt x (T, C)
    x3 = jnp.concatenate(rows, axis=0).reshape(b_tile, t, c)       # (Bt, T, C)

    # ---- spatial tokens + positional embedding rows 1..HW (no HW+1 concat).
    tok = (x3 + poshw_ref[...][None, :, :]).reshape(b_tile * t, c)  # (Bt*T, C)

    # ---- spatial key/value projections: big MXU matmuls, M = Bt*T rows.
    k = jnp.dot(tok, wk_ref[...], preferred_element_type=f32) + bk_ref[...]  # (Bt*T, C)
    v = jnp.dot(tok, wv_ref[...], preferred_element_type=f32) + bv_ref[...]  # (Bt*T, C)
    k3 = k.reshape(b_tile, t, c)
    v3 = v.reshape(b_tile, t, c)

    # ---- pooled token q / k0 / v0.
    #      q  = mean_x @ Wq_scaled + dq            (dq = pos0 @ Wq_s + bq_s)
    #      k0 = mean_t k[t]       + dk             (dk = (pos0 - mean pos_hw) @ Wk)
    #      v0 = mean_t v[t]       + dv
    #      (k0 / v0 derived from the spatial projections: no extra tiny-M matmuls.)
    q = jnp.dot(mean_x.astype(x_cm.dtype), wq_ref[...],
                preferred_element_type=f32) + dq_ref[...]          # (Bt, C) f32
    k0 = jnp.mean(k3, axis=1) + dk_ref[...]                        # (Bt, C) f32
    v0 = jnp.mean(v3, axis=1) + dv_ref[...]                        # (Bt, C) f32

    mask = mask_ref[...].astype(f32)                               # (C, H)
    maskt = maskt_ref[...].astype(f32)                             # (H, C)

    # ---- per-head scores via the block-diagonal head mask (no head loop):
    #      s[b, t, h] = sum_{c in head h} q[b, c] * k[b, t, c]
    qk = (q[:, None, :] * k3).reshape(b_tile * t, c)               # (Bt*T, C)
    s = jnp.dot(qk, mask,
                preferred_element_type=f32).reshape(b_tile, t, num_heads)  # (Bt,T,H)
    s0 = jnp.dot(q * k0, mask, preferred_element_type=f32)         # (Bt, H)

    # ---- softmax over the HW spatial keys + the pooled key (folded column),
    #      all in f32 on the VPU/EUP.
    m = jnp.maximum(jnp.max(s, axis=1), s0)                        # (Bt, H)
    p = jnp.exp(s - m[:, None, :])                                 # (Bt, T, H)
    p0 = jnp.exp(s0 - m)                                           # (Bt, H)
    inv_l = 1.0 / (p0 + jnp.sum(p, axis=1))                        # (Bt, H) exact

    # ---- expand head probabilities back to channels and combine with values.
    p_full = jnp.dot(p.reshape(b_tile * t, num_heads), maskt,
                     preferred_element_type=f32).reshape(b_tile, t, c)   # (Bt,T,C)
    p0_full = jnp.dot(p0, maskt, preferred_element_type=f32)             # (Bt, C)
    inv_full = jnp.dot(inv_l, maskt, preferred_element_type=f32)         # (Bt, C)

    ctx = (jnp.sum(p_full * v3, axis=1) + p0_full * v0) * inv_full       # (Bt, C)

    # ---- output projection.
    out = jnp.dot(ctx.astype(wc_ref.dtype), wc_ref[...],
                  preferred_element_type=f32) + bc_ref[...]              # (Bt, O)
    out_ref[...] = out.astype(out_ref.dtype)


# ----------------------------------------------------------------------------
# Wrapper
# ----------------------------------------------------------------------------
def attention_pool_2d(x_nchw, params, num_heads, *,
                      compute_dtype=jnp.bfloat16, b_tile=None):
    n, c, h, w = x_nchw.shape
    t = h * w
    o = params["wc_t"].shape[1]
    assert c % num_heads == 0
    hd = c // num_heads
    scale = float(hd) ** -0.5

    if b_tile is None:
        b_tile = math.gcd(n, 8)          # batch rows per grid step
    assert n % b_tile == 0
    grid = (n // b_tile,)
    # TODO(synk): on v7x pick b_tile so the grid extent is even (2 TensorCores).

    dt = compute_dtype
    # NCHW -> (N, C, HW): a free contiguous reshape — no HBM transpose here.
    x_cm = x_nchw.reshape(n, c, t).astype(dt)

    pos = params["pos"].astype(jnp.float32)
    pos0, pos_hw = pos[:1], pos[1:]                                 # (1,C), (T,C)

    # Fold the attention scale (hd**-0.5, applied after the bias in PyTorch's
    # multi_head_attention_forward) into the q projection weight / delta.
    wq_s = params["wq_t"] * scale
    bq_s = params["bq"] * scale

    # Host-precomputed (1, C) delta vectors for the pooled token (f32):
    #   dq folds pos0 and the scaled q bias; dk/dv turn the pooled-token k/v
    #   projections into "mean of spatial k/v + constant" inside the kernel.
    dq = (pos0 @ wq_s + bq_s).astype(jnp.float32)                   # (1, C)
    dpos = pos0 - jnp.mean(pos_hw, axis=0, keepdims=True)           # (1, C)
    dk = (dpos @ params["wk_t"]).astype(jnp.float32)                # (1, C)
    dv = (dpos @ params["wv_t"]).astype(jnp.float32)                # (1, C)

    wq = wq_s.astype(dt)
    wk, bk = params["wk_t"].astype(dt), params["bk"].astype(dt)
    wv, bv = params["wv_t"].astype(dt), params["bv"].astype(dt)
    wc, bc = params["wc_t"].astype(dt), params["bc"].astype(dt)
    pos_hw_c = pos_hw.astype(dt)

    # Block-diagonal head-selection mask: mask[c, h] = 1 iff channel c is in head h.
    head_ids = jnp.arange(c, dtype=jnp.int32) // hd
    mask = (head_ids[:, None] == jnp.arange(num_heads, dtype=jnp.int32)[None, :]
            ).astype(dt)                                            # (C, H)
    mask_t = mask.T                                                 # (H, C)

    kernel = functools.partial(_attnpool_kernel, b_tile=b_tile,
                               num_heads=num_heads)

    const = lambda i: (0, 0)
    return pl.pallas_call(
        kernel,
        out_shape=jax.ShapeDtypeStruct((n, o), jnp.float32),
        grid_spec=pltpu.PrefetchScalarGridSpec(
            num_scalar_prefetch=0,
            grid=grid,
            in_specs=[
                pl.BlockSpec((b_tile, c, t), lambda i: (i, 0, 0)),   # x (C-major)
                pl.BlockSpec((t, c), const),                         # pos[1:]
                pl.BlockSpec((c, num_heads), const),                 # head mask
                pl.BlockSpec((num_heads, c), const),                 # head mask^T
                pl.BlockSpec((c, c), const), pl.BlockSpec((1, c), const),  # q: W, dq
                pl.BlockSpec((c, c), const), pl.BlockSpec((1, c), const),  # k: W, b
                pl.BlockSpec((1, c), const),                               #    dk
                pl.BlockSpec((c, c), const), pl.BlockSpec((1, c), const),  # v: W, b
                pl.BlockSpec((1, c), const),                               #    dv
                pl.BlockSpec((c, o), const), pl.BlockSpec((1, o), const),  # out proj
            ],
            out_specs=pl.BlockSpec((b_tile, o), lambda i: (i, 0)),
        ),
        compiler_params=pltpu.CompilerParams(
            dimension_semantics=("parallel",)),
        # TODO(synk): at CLIP dims (C=2048) also set vmem_limit_bytes and/or
        # pipeline_mode=pl.Buffered(1) on the weight specs (64 MiB VMEM on v7x).
    )(x_cm, pos_hw_c, mask, mask_t,
      wq, dq, wk, bk, dk, wv, bv, dv, wc, bc)


# ----------------------------------------------------------------------------
# Pure-JAX reference (full L x L attention, then row 0 — exact PyTorch
# semantics of F.multi_head_attention_forward followed by x[0]).
# ----------------------------------------------------------------------------
def ref_attention_pool_2d(x_nchw, params, num_heads):
    n, c, h, w = x_nchw.shape
    hw = h * w
    tkn = jnp.transpose(x_nchw.reshape(n, c, hw), (2, 0, 1))            # (HW, N, C)
    tkn = jnp.concatenate([tkn.mean(axis=0, keepdims=True), tkn], axis=0)
    tkn = tkn + params["pos"][:, None, :]
    l = tkn.shape[0]
    hd = c // num_heads
    scale = float(hd) ** -0.5

    q = (tkn @ params["wq_t"] + params["bq"]) * scale
    k = tkn @ params["wk_t"] + params["bk"]
    v = tkn @ params["wv_t"] + params["bv"]

    qh = q.reshape(l, n, num_heads, hd)
    kh = k.reshape(l, n, num_heads, hd)
    vh = v.reshape(l, n, num_heads, hd)
    s = jnp.einsum("qnhd,knhd->nhqk", qh, kh)
    p = jax.nn.softmax(s, axis=-1)
    ctx = jnp.einsum("nhqk,knhd->qnhd", p, vh).reshape(l, n, c)
    out = ctx @ params["wc_t"] + params["bc"]
    return out[0]                                                       # (N, O)


# ----------------------------------------------------------------------------
# Deterministic parameter construction (synthetic init, same shapes as module)
# ----------------------------------------------------------------------------
def make_params(key, spacial_dim, embed_dim, output_dim):
    l = spacial_dim ** 2 + 1
    ks = jax.random.split(key, 10)
    sc = 1.0 / (embed_dim ** 0.5)
    return {
        "pos":  jax.random.normal(ks[0], (l, embed_dim), jnp.float32) * sc,
        # weights stored already transposed: y = x @ W_t + b
        "wq_t": jax.random.normal(ks[1], (embed_dim, embed_dim), jnp.float32) * sc,
        "bq":   jax.random.normal(ks[2], (1, embed_dim), jnp.float32) * 0.1,
        "wk_t": jax.random.normal(ks[3], (embed_dim, embed_dim), jnp.float32) * sc,
        "bk":   jax.random.normal(ks[4], (1, embed_dim), jnp.float32) * 0.1,
        "wv_t": jax.random.normal(ks[5], (embed_dim, embed_dim), jnp.float32) * sc,
        "bv":   jax.random.normal(ks[6], (1, embed_dim), jnp.float32) * 0.1,
        "wc_t": jax.random.normal(ks[7], (embed_dim, output_dim), jnp.float32) * sc,
        "bc":   jax.random.normal(ks[8], (1, output_dim), jnp.float32) * 0.1,
    }


if __name__ == "__main__":
    # Small shapes consistent with the module:
    #   spacial_dim=4 -> HW=16 ; embed_dim=32 ; num_heads=4 ; output_dim=16
    batch, embed_dim, spacial_dim = 2, 32, 4
    num_heads, output_dim = 4, 16

    key = jax.random.PRNGKey(0)
    k_x, k_p = jax.random.split(key)
    x = jax.random.normal(k_x, (batch, embed_dim, spacial_dim, spacial_dim),
                          jnp.float32)            # NCHW, like the PyTorch module
    params = make_params(k_p, spacial_dim, embed_dim, output_dim)

    ref = ref_attention_pool_2d(x, params, num_heads)

    # Strict check of the kernel math in float32.
    out_f32 = jax.block_until_ready(
        attention_pool_2d(x, params, num_heads, compute_dtype=jnp.float32))
    np.testing.assert_allclose(np.asarray(out_f32), np.asarray(ref),
                               rtol=1e-4, atol=1e-4)

    # Default optimized path: bf16 operands, f32 accumulation (looser tolerance).
    out_bf16 = jax.block_until_ready(attention_pool_2d(x, params, num_heads))
    np.testing.assert_allclose(np.asarray(out_bf16), np.asarray(ref),
                               rtol=1e-1, atol=1e-1)

    print("KERNEL_OK")
</pallas_src>

<mosaic_0001>
module attributes {stable_mosaic.version = 11 : i64} {
  func.func @_attnpool_kernel(%arg0: i32, %arg1: memref<2x32x16xf32, #tpu.memory_space<vmem>>, %arg2: memref<16x32xf32, #tpu.memory_space<vmem>>, %arg3: memref<32x4xf32, #tpu.memory_space<vmem>>, %arg4: memref<4x32xf32, #tpu.memory_space<vmem>>, %arg5: memref<32x32xf32, #tpu.memory_space<vmem>>, %arg6: memref<1x32xf32, #tpu.memory_space<vmem>>, %arg7: memref<32x32xf32, #tpu.memory_space<vmem>>, %arg8: memref<1x32xf32, #tpu.memory_space<vmem>>, %arg9: memref<1x32xf32, #tpu.memory_space<vmem>>, %arg10: memref<32x32xf32, #tpu.memory_space<vmem>>, %arg11: memref<1x32xf32, #tpu.memory_space<vmem>>, %arg12: memref<1x32xf32, #tpu.memory_space<vmem>>, %arg13: memref<32x16xf32, #tpu.memory_space<vmem>>, %arg14: memref<1x16xf32, #tpu.memory_space<vmem>>, %arg15: memref<2x16xf32, #tpu.memory_space<vmem>>) attributes {dimension_semantics = [#tpu.dimension_semantics<parallel>], iteration_bounds = array<i64: 1>, scalar_prefetch = 0 : i64, scratch_operands = 0 : i64, tpu.core_type = #tpu.core_type<tc>, window_params = [{transform_indices = @transform_0, window_bounds = array<i64: 2, 32, 16>}, {pipeline_mode = #tpu.pipeline_mode<synchronous>, transform_indices = @transform_1, window_bounds = array<i64: 16, 32>}, {pipeline_mode = #tpu.pipeline_mode<synchronous>, transform_indices = @transform_2, window_bounds = array<i64: 32, 4>}, {pipeline_mode = #tpu.pipeline_mode<synchronous>, transform_indices = @transform_3, window_bounds = array<i64: 4, 32>}, {pipeline_mode = #tpu.pipeline_mode<synchronous>, transform_indices = @transform_4, window_bounds = array<i64: 32, 32>}, {pipeline_mode = #tpu.pipeline_mode<synchronous>, transform_indices = @transform_5, window_bounds = array<i64: 1, 32>}, {pipeline_mode = #tpu.pipeline_mode<synchronous>, transform_indices = @transform_6, window_bounds = array<i64: 32, 32>}, {pipeline_mode = #tpu.pipeline_mode<synchronous>, transform_indices = @transform_7, window_bounds = array<i64: 1, 32>}, {pipeline_mode = #tpu.pipeline_mode<synchronous>, transform_indices = @transform_8, window_bounds = array<i64: 1, 32>}, {pipeline_mode = #tpu.pipeline_mode<synchronous>, transform_indices = @transform_9, window_bounds = array<i64: 32, 32>}, {pipeline_mode = #tpu.pipeline_mode<synchronous>, transform_indices = @transform_10, window_bounds = array<i64: 1, 32>}, {pipeline_mode = #tpu.pipeline_mode<synchronous>, transform_indices = @transform_11, window_bounds = array<i64: 1, 32>}, {pipeline_mode = #tpu.pipeline_mode<synchronous>, transform_indices = @transform_12, window_bounds = array<i64: 32, 16>}, {pipeline_mode = #tpu.pipeline_mode<synchronous>, transform_indices = @transform_13, window_bounds = array<i64: 1, 16>}, {transform_indices = @transform_14, window_bounds = array<i64: 2, 16>}]} {
    %c0 = arith.constant 0 : index
    %c0_0 = arith.constant 0 : index
    %c0_1 = arith.constant 0 : index
    %0 = vector.load %arg1[%c0, %c0_0, %c0_1] : memref<2x32x16xf32, #tpu.memory_space<vmem>>, vector<2x32x16xf32>
    %cst = arith.constant dense<0.000000e+00> : vector<2x32xf32>
    %1 = vector.multi_reduction <add>, %0, %cst [2] : vector<2x32x16xf32> to vector<2x32xf32>
    %cst_2 = arith.constant 1.600000e+01 : f32
    %2 = vector.broadcast %cst_2 : f32 to vector<2x32xf32>
    %3 = arith.divf %1, %2 : vector<2x32xf32>
    %4 = vector.extract_strided_slice %0 {offsets = [0, 0, 0], sizes = [1, 32, 16], strides = [1, 1, 1]} : vector<2x32x16xf32> to vector<1x32x16xf32>
    %5 = vector.shape_cast %4 : vector<1x32x16xf32> to vector<32x16xf32>
    %6 = tpu.transpose %5, [1, 0] : vector<32x16xf32> -> vector<16x32xf32>
    %7 = vector.extract_strided_slice %0 {offsets = [1, 0, 0], sizes = [1, 32, 16], strides = [1, 1, 1]} : vector<2x32x16xf32> to vector<1x32x16xf32>
    %8 = vector.shape_cast %7 : vector<1x32x16xf32> to vector<32x16xf32>
    %9 = tpu.transpose %8, [1, 0] : vector<32x16xf32> -> vector<16x32xf32>
    %10 = tpu.concatenate %6, %9 in 0 : vector<16x32xf32>, vector<16x32xf32> -> vector<32x32xf32>
    %11 = vector.shape_cast %10 : vector<32x32xf32> to vector<2x16x32xf32>
    %c0_3 = arith.constant 0 : index
    %c0_4 = arith.constant 0 : index
    %12 = vector.load %arg2[%c0_3, %c0_4] : memref<16x32xf32, #tpu.memory_space<vmem>>, vector<16x32xf32>
    %13 = vector.shape_cast %12 : vector<16x32xf32> to vector<1x16x32xf32>
    %14 = vector.broadcast %13 : vector<1x16x32xf32> to vector<2x16x32xf32>
    %15 = arith.addf %11, %14 : vector<2x16x32xf32>
    %16 = vector.shape_cast %15 : vector<2x16x32xf32> to vector<32x32xf32>
    %c0_5 = arith.constant 0 : index
    %c0_6 = arith.constant 0 : index
    %17 = vector.load %arg7[%c0_5, %c0_6] : memref<32x32xf32, #tpu.memory_space<vmem>>, vector<32x32xf32>
    %cst_7 = arith.constant dense<0.000000e+00> : vector<32x32xf32>
    %18 = tpu.matmul %16, %17, %cst_7 {dimension_numbers = #tpu.dot_dimension_numbers<[1], [0], [0], [1], [0, 0, 1, 1], [], []>} : vector<32x32xf32>, vector<32x32xf32>, vector<32x32xf32> -> vector<32x32xf32>
    %c0_8 = arith.constant 0 : index
    %c0_9 = arith.constant 0 : index
    %19 = vector.load %arg8[%c0_8, %c0_9] : memref<1x32xf32, #tpu.memory_space<vmem>>, vector<1x32xf32>
    %20 = vector.broadcast %19 : vector<1x32xf32> to vector<32x32xf32>
    %21 = arith.addf %18, %20 : vector<32x32xf32>
    %c0_10 = arith.constant 0 : index
    %c0_11 = arith.constant 0 : index
    %22 = vector.load %arg10[%c0_10, %c0_11] : memref<32x32xf32, #tpu.memory_space<vmem>>, vector<32x32xf32>
    %cst_12 = arith.constant dense<0.000000e+00> : vector<32x32xf32>
    %23 = tpu.matmul %16, %22, %cst_12 {dimension_numbers = #tpu.dot_dimension_numbers<[1], [0], [0], [1], [0, 0, 1, 1], [], []>} : vector<32x32xf32>, vector<32x32xf32>, vector<32x32xf32> -> vector<32x32xf32>
    %c0_13 = arith.constant 0 : index
    %c0_14 = arith.constant 0 : index
    %24 = vector.load %arg11[%c0_13, %c0_14] : memref<1x32xf32, #tpu.memory_space<vmem>>, vector<1x32xf32>
    %25 = vector.broadcast %24 : vector<1x32xf32> to vector<32x32xf32>
    %26 = arith.addf %23, %25 : vector<32x32xf32>
    %27 = vector.shape_cast %21 : vector<32x32xf32> to vector<2x16x32xf32>
    %28 = vector.shape_cast %26 : vector<32x32xf32> to vector<2x16x32xf32>
    %c0_15 = arith.constant 0 : index
    %c0_16 = arith.constant 0 : index
    %29 = vector.load %arg5[%c0_15, %c0_16] : memref<32x32xf32, #tpu.memory_space<vmem>>, vector<32x32xf32>
    %cst_17 = arith.constant dense<0.000000e+00> : vector<2x32xf32>
    %30 = tpu.matmul %3, %29, %cst_17 {dimension_numbers = #tpu.dot_dimension_numbers<[1], [0], [0], [1], [0, 0, 1, 1], [], []>} : vector<2x32xf32>, vector<32x32xf32>, vector<2x32xf32> -> vector<2x32xf32>
    %c0_18 = arith.constant 0 : index
    %c0_19 = arith.constant 0 : index
    %31 = vector.load %arg6[%c0_18, %c0_19] : memref<1x32xf32, #tpu.memory_space<vmem>>, vector<1x32xf32>
    %32 = vector.broadcast %31 : vector<1x32xf32> to vector<2x32xf32>
    %33 = arith.addf %30, %32 : vector<2x32xf32>
    %cst_20 = arith.constant dense<0.000000e+00> : vector<2x32xf32>
    %34 = vector.multi_reduction <add>, %27, %cst_20 [1] : vector<2x16x32xf32> to vector<2x32xf32>
    %cst_21 = arith.constant 1.600000e+01 : f32
    %35 = vector.broadcast %cst_21 : f32 to vector<2x32xf32>
    %36 = arith.divf %34, %35 : vector<2x32xf32>
    %c0_22 = arith.constant 0 : index
    %c0_23 = arith.constant 0 : index
    %37 = vector.load %arg9[%c0_22, %c0_23] : memref<1x32xf32, #tpu.memory_space<vmem>>, vector<1x32xf32>
    %38 = vector.broadcast %37 : vector<1x32xf32> to vector<2x32xf32>
    %39 = arith.addf %36, %38 : vector<2x32xf32>
    %cst_24 = arith.constant dense<0.000000e+00> : vector<2x32xf32>
    %40 = vector.multi_reduction <add>, %28, %cst_24 [1] : vector<2x16x32xf32> to vector<2x32xf32>
    %cst_25 = arith.constant 1.600000e+01 : f32
    %41 = vector.broadcast %cst_25 : f32 to vector<2x32xf32>
    %42 = arith.divf %40, %41 : vector<2x32xf32>
    %c0_26 = arith.constant 0 : index
    %c0_27 = arith.constant 0 : index
    %43 = vector.load %arg12[%c0_26, %c0_27] : memref<1x32xf32, #tpu.memory_space<vmem>>, vector<1x32xf32>
    %44 = vector.broadcast %43 : vector<1x32xf32> to vector<2x32xf32>
    %45 = arith.addf %42, %44 : vector<2x32xf32>
    %c0_28 = arith.constant 0 : index
    %c0_29 = arith.constant 0 : index
    %46 = vector.load %arg3[%c0_28, %c0_29] : memref<32x4xf32, #tpu.memory_space<vmem>>, vector<32x4xf32>
    %c0_30 = arith.constant 0 : index
    %c0_31 = arith.constant 0 : index
    %47 = vector.load %arg4[%c0_30, %c0_31] : memref<4x32xf32, #tpu.memory_space<vmem>>, vector<4x32xf32>
    %48 = vector.shape_cast %33 : vector<2x32xf32> to vector<2x1x32xf32>
    %49 = vector.broadcast %48 : vector<2x1x32xf32> to vector<2x16x32xf32>
    %50 = arith.mulf %49, %27 : vector<2x16x32xf32>
    %51 = vector.shape_cast %50 : vector<2x16x32xf32> to vector<32x32xf32>
    %cst_32 = arith.constant dense<0.000000e+00> : vector<32x4xf32>
    %52 = tpu.matmul %51, %46, %cst_32 {dimension_numbers = #tpu.dot_dimension_numbers<[1], [0], [0], [1], [0, 0, 1, 1], [], []>} : vector<32x32xf32>, vector<32x4xf32>, vector<32x4xf32> -> vector<32x4xf32>
    %53 = vector.shape_cast %52 : vector<32x4xf32> to vector<2x16x4xf32>
    %54 = arith.mulf %33, %39 : vector<2x32xf32>
    %cst_33 = arith.constant dense<0.000000e+00> : vector<2x4xf32>
    %55 = tpu.matmul %54, %46, %cst_33 {dimension_numbers = #tpu.dot_dimension_numbers<[1], [0], [0], [1], [0, 0, 1, 1], [], []>} : vector<2x32xf32>, vector<32x4xf32>, vector<2x4xf32> -> vector<2x4xf32>
    %cst_34 = arith.constant dense<0xFF800000> : vector<2x4xf32>
    %56 = vector.multi_reduction <maximumf>, %53, %cst_34 [1] : vector<2x16x4xf32> to vector<2x4xf32>
    %57 = arith.maximumf %56, %55 : vector<2x4xf32>
    %58 = vector.shape_cast %57 : vector<2x4xf32> to vector<2x1x4xf32>
    %59 = vector.broadcast %58 : vector<2x1x4xf32> to vector<2x16x4xf32>
    %60 = arith.subf %53, %59 : vector<2x16x4xf32>
    %61 = math.exp %60 : vector<2x16x4xf32>
    %62 = arith.subf %55, %57 : vector<2x4xf32>
    %63 = math.exp %62 : vector<2x4xf32>
    %cst_35 = arith.constant dense<0.000000e+00> : vector<2x4xf32>
    %64 = vector.multi_reduction <add>, %61, %cst_35 [1] : vector<2x16x4xf32> to vector<2x4xf32>
    %65 = arith.addf %63, %64 : vector<2x4xf32>
    %cst_36 = arith.constant 1.000000e+00 : f32
    %66 = vector.broadcast %cst_36 : f32 to vector<2x4xf32>
    %67 = arith.divf %66, %65 : vector<2x4xf32>
    %68 = vector.shape_cast %61 : vector<2x16x4xf32> to vector<32x4xf32>
    %cst_37 = arith.constant dense<0.000000e+00> : vector<32x32xf32>
    %69 = tpu.matmul %68, %47, %cst_37 {dimension_numbers = #tpu.dot_dimension_numbers<[1], [0], [0], [1], [0, 0, 1, 1], [], []>} : vector<32x4xf32>, vector<4x32xf32>, vector<32x32xf32> -> vector<32x32xf32>
    %70 = vector.shape_cast %69 : vector<32x32xf32> to vector<2x16x32xf32>
    %cst_38 = arith.constant dense<0.000000e+00> : vector<2x32xf32>
    %71 = tpu.matmul %63, %47, %cst_38 {dimension_numbers = #tpu.dot_dimension_numbers<[1], [0], [0], [1], [0, 0, 1, 1], [], []>} : vector<2x4xf32>, vector<4x32xf32>, vector<2x32xf32> -> vector<2x32xf32>
    %cst_39 = arith.constant dense<0.000000e+00> : vector<2x32xf32>
    %72 = tpu.matmul %67, %47, %cst_39 {dimension_numbers = #tpu.dot_dimension_numbers<[1], [0], [0], [1], [0, 0, 1, 1], [], []>} : vector<2x4xf32>, vector<4x32xf32>, vector<2x32xf32> -> vector<2x32xf32>
    %73 = arith.mulf %70, %28 : vector<2x16x32xf32>
    %cst_40 = arith.constant dense<0.000000e+00> : vector<2x32xf32>
    %74 = vector.multi_reduction <add>, %73, %cst_40 [1] : vector<2x16x32xf32> to vector<2x32xf32>
    %75 = arith.mulf %71, %45 : vector<2x32xf32>
    %76 = arith.addf %74, %75 : vector<2x32xf32>
    %77 = arith.mulf %76, %72 : vector<2x32xf32>
    %c0_41 = arith.constant 0 : index
    %c0_42 = arith.constant 0 : index
    %78 = vector.load %arg13[%c0_41, %c0_42] : memref<32x16xf32, #tpu.memory_space<vmem>>, vector<32x16xf32>
    %cst_43 = arith.constant dense<0.000000e+00> : vector<2x16xf32>
    %79 = tpu.matmul %77, %78, %cst_43 {dimension_numbers = #tpu.dot_dimension_numbers<[1], [0], [0], [1], [0, 0, 1, 1], [], []>} : vector<2x32xf32>, vector<32x16xf32>, vector<2x16xf32> -> vector<2x16xf32>
    %c0_44 = arith.constant 0 : index
    %c0_45 = arith.constant 0 : index
    %80 = vector.load %arg14[%c0_44, %c0_45] : memref<1x16xf32, #tpu.memory_space<vmem>>, vector<1x16xf32>
    %81 = vector.broadcast %80 : vector<1x16xf32> to vector<2x16xf32>
    %82 = arith.addf %79, %81 : vector<2x16xf32>
    %c0_46 = arith.constant 0 : index
    %c0_47 = arith.constant 0 : index
    %83 = vector.load %arg15[%c0_46, %c0_47] : memref<2x16xf32, #tpu.memory_space<vmem>>, vector<2x16xf32>
    tpu.vector_store %arg15[%c0_46, %c0_47], %82 {strides = array<i32>} : memref<2x16xf32, #tpu.memory_space<vmem>>, vector<2x16xf32>,
    return
  }
  func.func @transform_0(%arg0: i32) -> (i32, i32, i32) {
    %c0_i32 = arith.constant 0 : i32
    %c0_i32_0 = arith.constant 0 : i32
    %c0_i32_1 = arith.constant 0 : i32
    return %arg0, %c0_i32, %c0_i32_0 : i32, i32, i32
  }
  func.func @transform_1(%arg0: i32) -> (i32, i32) {
    %c0_i32 = arith.constant 0 : i32
    %c0_i32_0 = arith.constant 0 : i32
    %c0_i32_1 = arith.constant 0 : i32
    return %c0_i32, %c0_i32_0 : i32, i32
  }
  func.func @transform_2(%arg0: i32) -> (i32, i32) {
    %c0_i32 = arith.constant 0 : i32
    %c0_i32_0 = arith.constant 0 : i32
    %c0_i32_1 = arith.constant 0 : i32
    return %c0_i32, %c0_i32_0 : i32, i32
  }
  func.func @transform_3(%arg0: i32) -> (i32, i32) {
    %c0_i32 = arith.constant 0 : i32
    %c0_i32_0 = arith.constant 0 : i32
    %c0_i32_1 = arith.constant 0 : i32
    return %c0_i32, %c0_i32_0 : i32, i32
  }
  func.func @transform_4(%arg0: i32) -> (i32, i32) {
    %c0_i32 = arith.constant 0 : i32
    %c0_i32_0 = arith.constant 0 : i32
    %c0_i32_1 = arith.constant 0 : i32
    return %c0_i32, %c0_i32_0 : i32, i32
  }
  func.func @transform_5(%arg0: i32) -> (i32, i32) {
    %c0_i32 = arith.constant 0 : i32
    %c0_i32_0 = arith.constant 0 : i32
    %c0_i32_1 = arith.constant 0 : i32
    return %c0_i32, %c0_i32_0 : i32, i32
  }
  func.func @transform_6(%arg0: i32) -> (i32, i32) {
    %c0_i32 = arith.constant 0 : i32
    %c0_i32_0 = arith.constant 0 : i32
    %c0_i32_1 = arith.constant 0 : i32
    return %c0_i32, %c0_i32_0 : i32, i32
  }
  func.func @transform_7(%arg0: i32) -> (i32, i32) {
    %c0_i32 = arith.constant 0 : i32
    %c0_i32_0 = arith.constant 0 : i32
    %c0_i32_1 = arith.constant 0 : i32
    return %c0_i32, %c0_i32_0 : i32, i32
  }
  func.func @transform_8(%arg0: i32) -> (i32, i32) {
    %c0_i32 = arith.constant 0 : i32
    %c0_i32_0 = arith.constant 0 : i32
    %c0_i32_1 = arith.constant 0 : i32
    return %c0_i32, %c0_i32_0 : i32, i32
  }
  func.func @transform_9(%arg0: i32) -> (i32, i32) {
    %c0_i32 = arith.constant 0 : i32
    %c0_i32_0 = arith.constant 0 : i32
    %c0_i32_1 = arith.constant 0 : i32
    return %c0_i32, %c0_i32_0 : i32, i32
  }
  func.func @transform_10(%arg0: i32) -> (i32, i32) {
    %c0_i32 = arith.constant 0 : i32
    %c0_i32_0 = arith.constant 0 : i32
    %c0_i32_1 = arith.constant 0 : i32
    return %c0_i32, %c0_i32_0 : i32, i32
  }
  func.func @transform_11(%arg0: i32) -> (i32, i32) {
    %c0_i32 = arith.constant 0 : i32
    %c0_i32_0 = arith.constant 0 : i32
    %c0_i32_1 = arith.constant 0 : i32
    return %c0_i32, %c0_i32_0 : i32, i32
  }
  func.func @transform_12(%arg0: i32) -> (i32, i32) {
    %c0_i32 = arith.constant 0 : i32
    %c0_i32_0 = arith.constant 0 : i32
    %c0_i32_1 = arith.constant 0 : i32
    return %c0_i32, %c0_i32_0 : i32, i32
  }
  func.func @transform_13(%arg0: i32) -> (i32, i32) {
    %c0_i32 = arith.constant 0 : i32
    %c0_i32_0 = arith.constant 0 : i32
    %c0_i32_1 = arith.constant 0 : i32
    return %c0_i32, %c0_i32_0 : i32, i32
  }
  func.func @transform_14(%arg0: i32) -> (i32, i32) {
    %c0_i32 = arith.constant 0 : i32
    %c0_i32_0 = arith.constant 0 : i32
    return %arg0, %c0_i32 : i32, i32
  }
}

</mosaic_0001>

<llo_original>
// kernel: tpu_custom_call.1
$region0: #{tpu_custom_call.1}
  #allocation0 [shape = 'u32[]', space=smem, size = 0x4, offset = 0x4, fixed_abs, tag = 'smem constant byte address 0x4 - core index']
  #allocation1 [shape = 'u32[144,128]{1,0:T(1,128)}', space=vmem, size = 0x12000, scoped, tag = 'internal scratch']
  %s0 = inlined_call_operand.vmem [shape: f32[2,32,16], index: 0, kind: input, shape index: {}]
  %s1 = inlined_call_operand.vmem [shape: f32[16,32], index: 1, kind: input, shape index: {}]
  %s2 = inlined_call_operand.vmem [shape: f32[32,4], index: 2, kind: input, shape index: {}]
  %s3 = inlined_call_operand.vmem [shape: f32[4,32], index: 3, kind: input, shape index: {}]
  %s4 = inlined_call_operand.vmem [shape: f32[32,32], index: 4, kind: input, shape index: {}]
  %s5 = inlined_call_operand.vmem [shape: f32[1,32], index: 5, kind: input, shape index: {}]
  %s6 = inlined_call_operand.vmem [shape: f32[32,32], index: 6, kind: input, shape index: {}]
  %s7 = inlined_call_operand.vmem [shape: f32[1,32], index: 7, kind: input, shape index: {}]
  %s8 = inlined_call_operand.vmem [shape: f32[1,32], index: 8, kind: input, shape index: {}]
  %s9 = inlined_call_operand.vmem [shape: f32[32,32], index: 9, kind: input, shape index: {}]
  %s10 = inlined_call_operand.vmem [shape: f32[1,32], index: 10, kind: input, shape index: {}]
  %s11 = inlined_call_operand.vmem [shape: f32[1,32], index: 11, kind: input, shape index: {}]
  %s12 = inlined_call_operand.vmem [shape: f32[32,16], index: 12, kind: input, shape index: {}]
  %s13 = inlined_call_operand.vmem [shape: f32[1,16], index: 13, kind: input, shape index: {}]
  %s14 = inlined_call_operand.hbm [shape: f32[2,16], index: 14, kind: output, shape index: {}]
  %s15 = sld [smem:[#allocation0]]
  $region66: #{tpu_custom_call.1} parent=0
    _
  %s17 = ssub.s32 1, %s15
  %s18 = scalar_select 0, %s17, %s15
  $region1: #{tpu_custom_call.1} parent=0
    #allocation2 [shape = 'u8[1024]{0}', space=vmem, size = 0x400, scoped, tag = 'output window, operand 0, single buffered']
    #allocation3 [shape = 's32[1]{0}', space=sflag, size = 0x4, scoped, tag = 'scoped memory for tpu_custom_call.1']
    %19 = vsyncpa [#allocation3], 0
    // Predicated region
    $region2: #{tpu_custom_call.1} parent=1 // pred_check
      _
    $region3: #{tpu_custom_call.1} parent=1 // pred_check_branch
      %21 = sbr.rel (0) target = $region5
    $region4: #{tpu_custom_call.1} parent=1 // pred_region
      _
    $region5: #{tpu_custom_call.1} parent=1 // pred_fallthru
      _
    // Predicated region
    $region6: #{tpu_custom_call.1} parent=1 // pred_check
      _
    $region7: #{tpu_custom_call.1} parent=1 // pred_check_branch
      %23 = sbr.rel (0) target = $region9
    $region8: #{tpu_custom_call.1} parent=1 // pred_region
      _
    $region9: #{tpu_custom_call.1} parent=1 // pred_fallthru
      _
    // Predicated region
    $region10: #{tpu_custom_call.1} parent=1 // pred_check
      _
    $region11: #{tpu_custom_call.1} parent=1 // pred_check_branch
      %25 = sbr.rel (0) target = $region13
    $region12: #{tpu_custom_call.1} parent=1 // pred_region
      _
    $region13: #{tpu_custom_call.1} parent=1 // pred_fallthru
      _
    // Predicated region
    $region14: #{tpu_custom_call.1} parent=1 // pred_check
      _
    $region15: #{tpu_custom_call.1} parent=1 // pred_check_branch
      %27 = sbr.rel (0) target = $region17
    $region16: #{tpu_custom_call.1} parent=1 // pred_region
      _
    $region17: #{tpu_custom_call.1} parent=1 // pred_fallthru
      _
    // Predicated region
    $region18: #{tpu_custom_call.1} parent=1 // pred_check
      _
    $region19: #{tpu_custom_call.1} parent=1 // pred_check_branch
      %29 = sbr.rel (0) target = $region21
    $region20: #{tpu_custom_call.1} parent=1 // pred_region
      _
    $region21: #{tpu_custom_call.1} parent=1 // pred_fallthru
      _
    // Predicated region
    $region22: #{tpu_custom_call.1} parent=1 // pred_check
      _
    $region23: #{tpu_custom_call.1} parent=1 // pred_check_branch
      %31 = sbr.rel (0) target = $region25
    $region24: #{tpu_custom_call.1} parent=1 // pred_region
      _
    $region25: #{tpu_custom_call.1} parent=1 // pred_fallthru
      _
    // Predicated region
    $region26: #{tpu_custom_call.1} parent=1 // pred_check
      _
    $region27: #{tpu_custom_call.1} parent=1 // pred_check_branch
      %33 = sbr.rel (0) target = $region29
    $region28: #{tpu_custom_call.1} parent=1 // pred_region
      _
    $region29: #{tpu_custom_call.1} parent=1 // pred_fallthru
      _
    // Predicated region
    $region30: #{tpu_custom_call.1} parent=1 // pred_check
      _
    $region31: #{tpu_custom_call.1} parent=1 // pred_check_branch
      %35 = sbr.rel (0) target = $region33
    $region32: #{tpu_custom_call.1} parent=1 // pred_region
      _
    $region33: #{tpu_custom_call.1} parent=1 // pred_fallthru
      _
    // Predicated region
    $region34: #{tpu_custom_call.1} parent=1 // pred_check
      _
    $region35: #{tpu_custom_call.1} parent=1 // pred_check_branch
      %37 = sbr.rel (0) target = $region37
    $region36: #{tpu_custom_call.1} parent=1 // pred_region
      _
    $region37: #{tpu_custom_call.1} parent=1 // pred_fallthru
      _
    // Predicated region
    $region38: #{tpu_custom_call.1} parent=1 // pred_check
      _
    $region39: #{tpu_custom_call.1} parent=1 // pred_check_branch
      %39 = sbr.rel (0) target = $region41
    $region40: #{tpu_custom_call.1} parent=1 // pred_region
      _
    $region41: #{tpu_custom_call.1} parent=1 // pred_fallthru
      _
    // Predicated region
    $region42: #{tpu_custom_call.1} parent=1 // pred_check
      _
    $region43: #{tpu_custom_call.1} parent=1 // pred_check_branch
      %41 = sbr.rel (0) target = $region45
    $region44: #{tpu_custom_call.1} parent=1 // pred_region
      _
    $region45: #{tpu_custom_call.1} parent=1 // pred_fallthru
      _
    // Predicated region
    $region46: #{tpu_custom_call.1} parent=1 // pred_check
      _
    $region47: #{tpu_custom_call.1} parent=1 // pred_check_branch
      %43 = sbr.rel (0) target = $region49
    $region48: #{tpu_custom_call.1} parent=1 // pred_region
      _
    $region49: #{tpu_custom_call.1} parent=1 // pred_fallthru
      _
    // Predicated region
    $region50: #{tpu_custom_call.1} parent=1 // pred_check
      _
    $region51: #{tpu_custom_call.1} parent=1 // pred_check_branch
      %45 = sbr.rel (0) target = $region53
    $region52: #{tpu_custom_call.1} parent=1 // pred_region
      _
    $region53: #{tpu_custom_call.1} parent=1 // pred_fallthru
      _
    // Predicated region
    $region54: #{tpu_custom_call.1} parent=1 // pred_check
      _
    $region55: #{tpu_custom_call.1} parent=1 // pred_check_branch
      %47 = sbr.rel (0) target = $region57
    $region56: #{tpu_custom_call.1} parent=1 // pred_region
      _
    $region57: #{tpu_custom_call.1} parent=1 // pred_fallthru
      _
    %v48 = vld [vmem:[%s0] sm:$0xff]
    %v49 = vld [vmem:[%s0 + $0x8] sm:$0xff]
    %v50 = vld [vmem:[%s0 + $0x10] sm:$0xff]
    %v51 = vld [vmem:[%s0 + $0x18] sm:$0xff]
    %v52 = vld [vmem:[%s0 + $0x20] sm:$0xff]
    %v53 = vld [vmem:[%s0 + $0x28] sm:$0xff]
    %v54 = vld [vmem:[%s0 + $0x30] sm:$0xff]
    %v55 = vld [vmem:[%s0 + $0x38] sm:$0xff]
    %vm56 = vcmask 130048
    %v57 = vsel %vm56, %v48, 0.0
    %58 = vadd.xlane.f32.xlu0 %v57
    %v59 = vpop.xlane.xlu0 %58
    %v60 = vsel %vm56, %v49, 0.0
    %61 = vadd.xlane.f32.xlu0 %v60
    %v62 = vpop.xlane.xlu0 %61
    %v63 = vsel %vm56, %v50, 0.0
    %64 = vadd.xlane.f32.xlu0 %v63
    %v65 = vpop.xlane.xlu0 %64
    %v66 = vsel %vm56, %v51, 0.0
    %67 = vadd.xlane.f32.xlu0 %v66
    %v68 = vpop.xlane.xlu0 %67
    %v69 = vsel %vm56, %v52, 0.0
    %70 = vadd.xlane.f32.xlu0 %v69
    %v71 = vpop.xlane.xlu0 %70
    %v72 = vsel %vm56, %v53, 0.0
    %73 = vadd.xlane.f32.xlu0 %v72
    %v74 = vpop.xlane.xlu0 %73
    %v75 = vsel %vm56, %v54, 0.0
    %76 = vadd.xlane.f32.xlu0 %v75
    %v77 = vpop.xlane.xlu0 %76
    %v78 = vsel %vm56, %v55, 0.0
    %79 = vadd.xlane.f32.xlu0 %v78
    %v80 = vpop.xlane.xlu0 %79
    %v81 = vrcp.pop 16.0
    %v82 = vmul.f32 %v59, %v81
    %v83 = vmul.f32 %v62, %v81
    %v84 = vmul.f32 %v65, %v81
    %v85 = vmul.f32 %v68, %v81
    %v86 = vmul.f32 %v71, %v81
    %v87 = vmul.f32 %v74, %v81
    %v88 = vmul.f32 %v77, %v81
    %v89 = vmul.f32 %v80, %v81
    %90 = vxpose.xlu0.b32.start [1/16] %v48, 128
    %91 = vxpose.xlu0.b32.cont [2/16] %v49, 128
    %92 = vxpose.xlu0.b32.cont [3/16] %v50, 128
    %93 = vxpose.xlu0.b32.cont [4/16] %v51, 128
    %94 = vxpose.xlu0.b32.cont [5/16] 0.0, 128
    %95 = vxpose.xlu0.b32.cont [6/16] 0.0, 128
    %96 = vxpose.xlu0.b32.cont [7/16] 0.0, 128
    %97 = vxpose.xlu0.b32.cont [8/16] 0.0, 128
    %98 = vxpose.xlu0.b32.cont [9/16] 0.0, 128
    %99 = vxpose.xlu0.b32.cont [10/16] 0.0, 128
    %100 = vxpose.xlu0.b32.cont [11/16] 0.0, 128
    %101 = vxpose.xlu0.b32.cont [12/16] 0.0, 128
    %102 = vxpose.xlu0.b32.cont [13/16] 0.0, 128
    %103 = vxpose.xlu0.b32.cont [14/16] 0.0, 128
    %104 = vxpose.xlu0.b32.cont [15/16] 0.0, 128
    %105 = vxpose.xlu0.b32.end [16/16] 0.0, 128
    %v106 = vpop.trf.xlu0
    %v107 = vpop.trf.xlu0
    %v108 = vpop.trf.xlu0
    %v109 = vpop.trf.xlu0
    %v110 = vpop.trf.xlu0
    %v111 = vpop.trf.xlu0
    %v112 = vpop.trf.xlu0
    %v113 = vpop.trf.xlu0
    %v114 = vpop.trf.xlu0
    %v115 = vpop.trf.xlu0
    %v116 = vpop.trf.xlu0
    %v117 = vpop.trf.xlu0
    %v118 = vpop.trf.xlu0
    %v119 = vpop.trf.xlu0
    %v120 = vpop.trf.xlu0
    %v121 = vpop.trf.xlu0
    %122 = vxpose.xlu0.b32.start [1/16] %v52, 128
    %123 = vxpose.xlu0.b32.cont [2/16] %v53, 128
    %124 = vxpose.xlu0.b32.cont [3/16] %v54, 128
    %125 = vxpose.xlu0.b32.cont [4/16] %v55, 128
    %126 = vxpose.xlu0.b32.cont [5/16] 0.0, 128
    %127 = vxpose.xlu0.b32.cont [6/16] 0.0, 128
    %128 = vxpose.xlu0.b32.cont [7/16] 0.0, 128
    %129 = vxpose.xlu0.b32.cont [8/16] 0.0, 128
    %130 = vxpose.xlu0.b32.cont [9/16] 0.0, 128
    %131 = vxpose.xlu0.b32.cont [10/16] 0.0, 128
    %132 = vxpose.xlu0.b32.cont [11/16] 0.0, 128
    %133 = vxpose.xlu0.b32.cont [12/16] 0.0, 128
    %134 = vxpose.xlu0.b32.cont [13/16] 0.0, 128
    %135 = vxpose.xlu0.b32.cont [14/16] 0.0, 128
    %136 = vxpose.xlu0.b32.cont [15/16] 0.0, 128
    %137 = vxpose.xlu0.b32.end [16/16] 0.0, 128
    %v138 = vpop.trf.xlu0
    %v139 = vpop.trf.xlu0
    %v140 = vpop.trf.xlu0
    %v141 = vpop.trf.xlu0
    %v142 = vpop.trf.xlu0
    %v143 = vpop.trf.xlu0
    %v144 = vpop.trf.xlu0
    %v145 = vpop.trf.xlu0
    %v146 = vpop.trf.xlu0
    %v147 = vpop.trf.xlu0
    %v148 = vpop.trf.xlu0
    %v149 = vpop.trf.xlu0
    %v150 = vpop.trf.xlu0
    %v151 = vpop.trf.xlu0
    %v152 = vpop.trf.xlu0
    %v153 = vpop.trf.xlu0
    %v154 = vld [vmem:[%s1] sm:$0xff]
    %v155 = vld [vmem:[%s1 + $0x8] sm:$0xff]
    %v156 = vadd.f32 %v106, %v154
    %v157 = vadd.f32 %v107, %v155
    %v158 = vadd.f32 %v138, %v154
    %v159 = vadd.f32 %v139, %v155
    %v160 = vld [vmem:[%s6] sm:$0xff]
    %v161 = vld [vmem:[%s6 + $0x8] sm:$0xff]
    %v162 = vld [vmem:[%s6 + $0x10] sm:$0xff]
    %v163 = vld [vmem:[%s6 + $0x18] sm:$0xff]
    %v164 = vld [vmem:[%s7] sm:$0x1]
    %v166 = vlaneseq
    %v167 = vshrl.u32 %v166, 7
    %v168 = vsub.s32 0, %v167
    %v169 = vrot.slane %v164, %v168
    %vm171 = vcmask 261120
    %v173 = vsel %vm171, %v156, 0
    %v176 = vsel %vm171, %v157, 0
    %v179 = vsel %vm171, %v158, 0
    %v182 = vsel %vm171, %v159, 0
    %184 = vmatprep.subr.mxu0 0.0
    %185 = vmatpush1.msra.mxu0 %v160
    %186 = vmatprep.subr.mxu0 0.0
    %187 = vmatpush1.msra.mxu0 %v161
    %188 = vmatprep.subr.mxu0 0.0
    %189 = vmatpush1.msra.mxu0 %v162
    %190 = vmatprep.subr.mxu0 0.0
    %191 = vmatpush1.msra.mxu0 %v163
    %192 = vmatprep.subr.mxu0 0.0
    %193 = vmatpush1.msra.mxu0 0.0
    %194 = vmatprep.subr.mxu0 0.0
    %195 = vmatpush1.msra.mxu0 0.0
    %196 = vmatprep.subr.mxu0 0.0
    %197 = vmatpush1.msra.mxu0 0.0
    %198 = vmatprep.subr.mxu0 0.0
    %199 = vmatpush1.msra.mxu0 0.0
    %200 = vmatprep.subr.mxu0 0.0
    %201 = vmatpush1.msra.mxu0 0.0
    %202 = vmatprep.subr.mxu0 0.0
    %203 = vmatpush1.msra.mxu0 0.0
    %204 = vmatprep.subr.mxu0 0.0
    %205 = vmatpush1.msra.mxu0 0.0
    %206 = vmatprep.subr.mxu0 0.0
    %207 = vmatpush1.msra.mxu0 0.0
    %208 = vmatprep.subr.mxu0 0.0
    %209 = vmatpush1.msra.mxu0 0.0
    %210 = vmatprep.subr.mxu0 0.0
    %211 = vmatpush1.msra.mxu0 0.0
    %212 = vmatprep.subr.mxu0 0.0
    %213 = vmatpush1.msra.mxu0 0.0
    %214 = vmatprep.subr.mxu0 0.0
    %215 = vmatpush1.msra.mxu0 0.0
    %216 = vmatprep.subr.mxu0 0.0
    %217 = vmatpush1.msra.mxu0 0.0
    %218 = vmatprep.subr.mxu0 0.0
    %219 = vmatpush1.msra.mxu0 0.0
    %220 = vmatprep.subr.mxu0 0.0
    %221 = vmatpush1.msra.mxu0 0.0
    %222 = vmatprep.subr.mxu0 0.0
    %223 = vmatpush1.msra.mxu0 0.0
    %224 = vmatprep.subr.mxu0 0.0
    %225 = vmatpush1.msra.mxu0 0.0
    %226 = vmatprep.subr.mxu0 0.0
    %227 = vmatpush1.msra.mxu0 0.0
    %228 = vmatprep.subr.mxu0 0.0
    %229 = vmatpush1.msra.mxu0 0.0
    %230 = vmatprep.subr.mxu0 0.0
    %231 = vmatpush1.msra.mxu0 0.0
    %232 = vmatprep.subr.mxu0 0.0
    %233 = vmatpush1.msra.mxu0 0.0
    %234 = vmatprep.subr.mxu0 0.0
    %235 = vmatpush1.msra.mxu0 0.0
    %236 = vmatprep.subr.mxu0 0.0
    %237 = vmatpush1.msra.mxu0 0.0
    %238 = vmatprep.subr.mxu0 0.0
    %239 = vmatpush1.msra.mxu0 0.0
    %240 = vmatprep.subr.mxu0 0.0
    %241 = vmatpush1.msra.mxu0 0.0
    %242 = vmatprep.subr.mxu0 0.0
    %243 = vmatpush1.msra.mxu0 0.0
    %244 = vmatprep.subr.mxu0 0.0
    %245 = vmatpush1.msra.mxu0 0.0
    %246 = vmatprep.subr.mxu0 0.0
    %247 = vmatpush1.msra.mxu0 0.0
    %248 = vmatprep.mubr.f32.mxu0 0.0
    %249 = vmatmul.mubr.f32.gmra.mrb[0].mxu0 %v173
    %v250 = vpop.f32.mrb[0].mxu0
    %v251 = vadd.f32 %v169, %v250
    %v252 = vpop.f32.mrb[0].mxu0
    %253 = vmatprep.mubr.f32.mxu0 0.0
    %254 = vmatmul.mubr.f32.gmra.mrb[0].mxu0 %v176
    %v255 = vpop.f32.mrb[0].mxu0
    %v256 = vadd.f32 %v169, %v255
    %v257 = vpop.f32.mrb[0].mxu0
    %258 = vmatprep.mubr.f32.mxu0 0.0
    %259 = vmatmul.mubr.f32.gmra.mrb[0].mxu0 %v179
    %v260 = vpop.f32.mrb[0].mxu0
    %v261 = vadd.f32 %v169, %v260
    %v262 = vpop.f32.mrb[0].mxu0
    %263 = vmatprep.mubr.f32.mxu0 0.0
    %264 = vmatmul.mubr.f32.gmra.mrb[0].mxu0 %v182
    %v265 = vpop.f32.mrb[0].mxu0
    %v266 = vadd.f32 %v169, %v265
    %v267 = vpop.f32.mrb[0].mxu0
    %268 = vdwg.mxu0
    %v269 = vld [vmem:[%s9] sm:$0xff]
    %v270 = vld [vmem:[%s9 + $0x8] sm:$0xff]
    %v271 = vld [vmem:[%s9 + $0x10] sm:$0xff]
    %v272 = vld [vmem:[%s9 + $0x18] sm:$0xff]
    %v273 = vld [vmem:[%s10] sm:$0x1]
    %v275 = vlaneseq
    %v276 = vshrl.u32 %v275, 7
    %v277 = vsub.s32 0, %v276
    %v278 = vrot.slane %v273, %v277
    %280 = vmatprep.subr.mxu0 0.0
    %281 = vmatpush1.msra.mxu0 %v269
    %282 = vmatprep.subr.mxu0 0.0
    %283 = vmatpush1.msra.mxu0 %v270
    %284 = vmatprep.subr.mxu0 0.0
    %285 = vmatpush1.msra.mxu0 %v271
    %286 = vmatprep.subr.mxu0 0.0
    %287 = vmatpush1.msra.mxu0 %v272
    %288 = vmatprep.subr.mxu0 0.0
    %289 = vmatpush1.msra.mxu0 0.0
    %290 = vmatprep.subr.mxu0 0.0
    %291 = vmatpush1.msra.mxu0 0.0
    %292 = vmatprep.subr.mxu0 0.0
    %293 = vmatpush1.msra.mxu0 0.0
    %294 = vmatprep.subr.mxu0 0.0
    %295 = vmatpush1.msra.mxu0 0.0
    %296 = vmatprep.subr.mxu0 0.0
    %297 = vmatpush1.msra.mxu0 0.0
    %298 = vmatprep.subr.mxu0 0.0
    %299 = vmatpush1.msra.mxu0 0.0
    %300 = vmatprep.subr.mxu0 0.0
    %301 = vmatpush1.msra.mxu0 0.0
    %302 = vmatprep.subr.mxu0 0.0
    %303 = vmatpush1.msra.mxu0 0.0
    %304 = vmatprep.subr.mxu0 0.0
    %305 = vmatpush1.msra.mxu0 0.0
    %306 = vmatprep.subr.mxu0 0.0
    %307 = vmatpush1.msra.mxu0 0.0
    %308 = vmatprep.subr.mxu0 0.0
    %309 = vmatpush1.msra.mxu0 0.0
    %310 = vmatprep.subr.mxu0 0.0
    %311 = vmatpush1.msra.mxu0 0.0
    %312 = vmatprep.subr.mxu0 0.0
    %313 = vmatpush1.msra.mxu0 0.0
    %314 = vmatprep.subr.mxu0 0.0
    %315 = vmatpush1.msra.mxu0 0.0
    %316 = vmatprep.subr.mxu0 0.0
    %317 = vmatpush1.msra.mxu0 0.0
    %318 = vmatprep.subr.mxu0 0.0
    %319 = vmatpush1.msra.mxu0 0.0
    %320 = vmatprep.subr.mxu0 0.0
    %321 = vmatpush1.msra.mxu0 0.0
    %322 = vmatprep.subr.mxu0 0.0
    %323 = vmatpush1.msra.mxu0 0.0
    %324 = vmatprep.subr.mxu0 0.0
    %325 = vmatpush1.msra.mxu0 0.0
    %326 = vmatprep.subr.mxu0 0.0
    %327 = vmatpush1.msra.mxu0 0.0
    %328 = vmatprep.subr.mxu0 0.0
    %329 = vmatpush1.msra.mxu0 0.0
    %330 = vmatprep.subr.mxu0 0.0
    %331 = vmatpush1.msra.mxu0 0.0
    %332 = vmatprep.subr.mxu0 0.0
    %333 = vmatpush1.msra.mxu0 0.0
    %334 = vmatprep.subr.mxu0 0.0
    %335 = vmatpush1.msra.mxu0 0.0
    %336 = vmatprep.subr.mxu0 0.0
    %337 = vmatpush1.msra.mxu0 0.0
    %338 = vmatprep.subr.mxu0 0.0
    %339 = vmatpush1.msra.mxu0 0.0
    %340 = vmatprep.subr.mxu0 0.0
    %341 = vmatpush1.msra.mxu0 0.0
    %342 = vmatprep.subr.mxu0 0.0
    %343 = vmatpush1.msra.mxu0 0.0
    %344 = vmatprep.mubr.f32.mxu0 0.0
    %345 = vmatmul.mubr.f32.gmra.mrb[0].mxu0 %v173
    %v346 = vpop.f32.mrb[0].mxu0
    %v347 = vadd.f32 %v278, %v346
    %v348 = vpop.f32.mrb[0].mxu0
    %349 = vmatprep.mubr.f32.mxu0 0.0
    %350 = vmatmul.mubr.f32.gmra.mrb[0].mxu0 %v176
    %v351 = vpop.f32.mrb[0].mxu0
    %v352 = vadd.f32 %v278, %v351
    %v353 = vpop.f32.mrb[0].mxu0
    %354 = vmatprep.mubr.f32.mxu0 0.0
    %355 = vmatmul.mubr.f32.gmra.mrb[0].mxu0 %v179
    %v356 = vpop.f32.mrb[0].mxu0
    %v357 = vadd.f32 %v278, %v356
    %v358 = vpop.f32.mrb[0].mxu0
    %359 = vmatprep.mubr.f32.mxu0 0.0
    %360 = vmatmul.mubr.f32.gmra.mrb[0].mxu0 %v182
    %v361 = vpop.f32.mrb[0].mxu0
    %v362 = vadd.f32 %v278, %v361
    %v363 = vpop.f32.mrb[0].mxu0
    %364 = vdwg.mxu0
    %v365 = vld [vmem:[%s4] sm:$0xff]
    %v366 = vld [vmem:[%s4 + $0x8] sm:$0xff]
    %v367 = vld [vmem:[%s4 + $0x10] sm:$0xff]
    %v368 = vld [vmem:[%s4 + $0x18] sm:$0xff]
    %v369 = vld [vmem:[%s5] sm:$0x1]
    %v371 = vlaneseq
    %v372 = vshrl.u32 %v371, 7
    %v373 = vsub.s32 0, %v372
    %v374 = vrot.slane %v369, %v373
    %v384 = vlaneseq
    %v385 = vand.u32 %v384, 127
    %v386 = vlaneseq
    %v387 = vshrl.u32 %v386, 7
    %v388 = vsub.s32 %v385, %v387
    %v389 = vrot.slane %v82, %v388
    %v390 = vadd.s32 %v385, 4294967288
    %v391 = vlaneseq
    %v392 = vshrl.u32 %v391, 7
    %v393 = vsub.s32 %v390, %v392
    %v394 = vrot.slane %v83, %v393
    %vm395 = vcmask 130112
    %v396 = vsel %vm395, %v394, %v389
    %v397 = vadd.s32 %v385, 4294967280
    %v398 = vlaneseq
    %v399 = vshrl.u32 %v398, 7
    %v400 = vsub.s32 %v397, %v399
    %v401 = vrot.slane %v84, %v400
    %vm402 = vcmask 195712
    %v403 = vsel %vm402, %v401, %v396
    %v404 = vadd.s32 %v385, 4294967272
    %v405 = vlaneseq
    %v406 = vshrl.u32 %v405, 7
    %v407 = vsub.s32 %v404, %v406
    %v408 = vrot.slane %v85, %v407
    %vm409 = vcmask 261312
    %v410 = vsel %vm409, %v408, %v403
    %v411 = vlaneseq
    %v412 = vshrl.u32 %v411, 7
    %v413 = vsub.s32 %v385, %v412
    %v414 = vrot.slane %v86, %v413
    %v415 = vlaneseq
    %v416 = vshrl.u32 %v415, 7
    %v417 = vsub.s32 %v390, %v416
    %v418 = vrot.slane %v87, %v417
    %v419 = vsel %vm395, %v418, %v414
    %v420 = vlaneseq
    %v421 = vshrl.u32 %v420, 7
    %v422 = vsub.s32 %v397, %v421
    %v423 = vrot.slane %v88, %v422
    %v424 = vsel %vm402, %v423, %v419
    %v425 = vlaneseq
    %v426 = vshrl.u32 %v425, 7
    %v427 = vsub.s32 %v404, %v426
    %v428 = vrot.slane %v89, %v427
    %v429 = vsel %vm409, %v428, %v424
    %vm430 = vcmask 1041409
    %v431 = vsel %vm430, %v429, %v410
    %v432 = vsel %vm171, %v431, 0
    %434 = vmatprep.subr.mxu0 0.0
    %435 = vmatpush1.msra.mxu0 %v365
    %436 = vmatprep.subr.mxu0 0.0
    %437 = vmatpush1.msra.mxu0 %v366
    %438 = vmatprep.subr.mxu0 0.0
    %439 = vmatpush1.msra.mxu0 %v367
    %440 = vmatprep.subr.mxu0 0.0
    %441 = vmatpush1.msra.mxu0 %v368
    %442 = vmatprep.subr.mxu0 0.0
    %443 = vmatpush1.msra.mxu0 0.0
    %444 = vmatprep.subr.mxu0 0.0
    %445 = vmatpush1.msra.mxu0 0.0
    %446 = vmatprep.subr.mxu0 0.0
    %447 = vmatpush1.msra.mxu0 0.0
    %448 = vmatprep.subr.mxu0 0.0
    %449 = vmatpush1.msra.mxu0 0.0
    %450 = vmatprep.subr.mxu0 0.0
    %451 = vmatpush1.msra.mxu0 0.0
    %452 = vmatprep.subr.mxu0 0.0
    %453 = vmatpush1.msra.mxu0 0.0
    %454 = vmatprep.subr.mxu0 0.0
    %455 = vmatpush1.msra.mxu0 0.0
    %456 = vmatprep.subr.mxu0 0.0
    %457 = vmatpush1.msra.mxu0 0.0
    %458 = vmatprep.subr.mxu0 0.0
    %459 = vmatpush1.msra.mxu0 0.0
    %460 = vmatprep.subr.mxu0 0.0
    %461 = vmatpush1.msra.mxu0 0.0
    %462 = vmatprep.subr.mxu0 0.0
    %463 = vmatpush1.msra.mxu0 0.0
    %464 = vmatprep.subr.mxu0 0.0
    %465 = vmatpush1.msra.mxu0 0.0
    %466 = vmatprep.subr.mxu0 0.0
    %467 = vmatpush1.msra.mxu0 0.0
    %468 = vmatprep.subr.mxu0 0.0
    %469 = vmatpush1.msra.mxu0 0.0
    %470 = vmatprep.subr.mxu0 0.0
    %471 = vmatpush1.msra.mxu0 0.0
    %472 = vmatprep.subr.mxu0 0.0
    %473 = vmatpush1.msra.mxu0 0.0
    %474 = vmatprep.subr.mxu0 0.0
    %475 = vmatpush1.msra.mxu0 0.0
    %476 = vmatprep.subr.mxu0 0.0
    %477 = vmatpush1.msra.mxu0 0.0
    %478 = vmatprep.subr.mxu0 0.0
    %479 = vmatpush1.msra.mxu0 0.0
    %480 = vmatprep.subr.mxu0 0.0
    %481 = vmatpush1.msra.mxu0 0.0
    %482 = vmatprep.subr.mxu0 0.0
    %483 = vmatpush1.msra.mxu0 0.0
    %484 = vmatprep.subr.mxu0 0.0
    %485 = vmatpush1.msra.mxu0 0.0
    %486 = vmatprep.subr.mxu0 0.0
    %487 = vmatpush1.msra.mxu0 0.0
    %488 = vmatprep.subr.mxu0 0.0
    %489 = vmatpush1.msra.mxu0 0.0
    %490 = vmatprep.subr.mxu0 0.0
    %491 = vmatpush1.msra.mxu0 0.0
    %492 = vmatprep.subr.mxu0 0.0
    %493 = vmatpush1.msra.mxu0 0.0
    %494 = vmatprep.subr.mxu0 0.0
    %495 = vmatpush1.msra.mxu0 0.0
    %496 = vmatprep.subr.mxu0 0.0
    %497 = vmatpush1.msra.mxu0 0.0
    %498 = vmatprep.mubr.f32.mxu0 0.0
    %499 = vmatmul.mubr.f32.gmra.mrb[0].mxu0 %v432
    %v500 = vpop.f32.mrb[0].mxu0
    %v501 = vadd.f32 %v374, %v500
    %v502 = vpop.f32.mrb[0].mxu0
    %503 = vdwg.mxu0
    %v504 = vsel %vm171, %v251, 0.0
    %v505 = vsel %vm171, %v256, 0.0
    %v506 = vadd.f32 %v504, %v505
    %v507 = vrot.slane %v506, 4
    %v508 = vadd.f32 %v506, %v507
    %v509 = vrot.slane %v508, 2
    %v510 = vadd.f32 %v508, %v509
    %v511 = vrot.slane %v510, 1
    %v512 = vadd.f32 %v510, %v511
    %v513 = vsel %vm171, %v261, 0.0
    %v514 = vsel %vm171, %v266, 0.0
    %v515 = vadd.f32 %v513, %v514
    %v516 = vrot.slane %v515, 4
    %v517 = vadd.f32 %v515, %v516
    %v518 = vrot.slane %v517, 2
    %v519 = vadd.f32 %v517, %v518
    %v520 = vrot.slane %v519, 1
    %v521 = vadd.f32 %v519, %v520
    %v522 = vmul.f32 %v512, %v81
    %v523 = vmul.f32 %v521, %v81
    %v524 = vld [vmem:[%s8] sm:$0x1]
    %v526 = vlaneseq
    %v527 = vshrl.u32 %v526, 7
    %v528 = vsub.s32 0, %v527
    %v529 = vrot.slane %v524, %v528
    %v531 = vadd.f32 %v522, %v529
    %v532 = vadd.f32 %v523, %v529
    %v533 = vsel %vm171, %v347, 0.0
    %v534 = vsel %vm171, %v352, 0.0
    %v535 = vadd.f32 %v533, %v534
    %v536 = vrot.slane %v535, 4
    %v537 = vadd.f32 %v535, %v536
    %v538 = vrot.slane %v537, 2
    %v539 = vadd.f32 %v537, %v538
    %v540 = vrot.slane %v539, 1
    %v541 = vadd.f32 %v539, %v540
    %v542 = vsel %vm171, %v357, 0.0
    %v543 = vsel %vm171, %v362, 0.0
    %v544 = vadd.f32 %v542, %v543
    %v545 = vrot.slane %v544, 4
    %v546 = vadd.f32 %v544, %v545
    %v547 = vrot.slane %v546, 2
    %v548 = vadd.f32 %v546, %v547
    %v549 = vrot.slane %v548, 1
    %v550 = vadd.f32 %v548, %v549
    %v551 = vmul.f32 %v541, %v81
    %v552 = vmul.f32 %v550, %v81
    %v553 = vld [vmem:[%s11] sm:$0x1]
    %v555 = vlaneseq
    %v556 = vshrl.u32 %v555, 7
    %v557 = vsub.s32 0, %v556
    %v558 = vrot.slane %v553, %v557
    %v560 = vadd.f32 %v551, %v558
    %v561 = vadd.f32 %v552, %v558
    %v562 = vld [vmem:[%s2] sm:$0xff]
    %v563 = vld [vmem:[%s2 + $0x8] sm:$0xff]
    %v564 = vld [vmem:[%s2 + $0x10] sm:$0xff]
    %v565 = vld [vmem:[%s2 + $0x18] sm:$0xff]
    %v566 = vld [vmem:[%s3] sm:$0xf]
    %v569 = vunpack.c.l.s4 1966171168
    %v570 = vunpack.c.0.s8 %v569
    %v571 = vlaneseq
    %v572 = vshrl.u32 %v571, 7
    %v573 = vsub.s32 %v570, %v572
    %v574 = vrot.slane %v501, %v573
    %v575 = vcombine.high %v574, %v574
    %v577 = vunpack.c.l.s4 1966171168
    %v578 = vunpack.c.0.s8 %v577
    %v579 = vlaneseq
    %v580 = vshrl.u32 %v579, 7
    %v581 = vsub.s32 %v578, %v580
    %v582 = vrot.slane %v574, %v581
    %v584 = vunpack.c.l.s4 1966171168
    %v585 = vunpack.c.0.s8 %v584
    %v586 = vlaneseq
    %v587 = vshrl.u32 %v586, 7
    %v588 = vsub.s32 %v585, %v587
    %v589 = vrot.slane %v575, %v588
    %v590 = vlaneseq
    %v591 = vshrl.u32 %v590, 7
    %v592 = vsub.s32 0, %v591
    %v593 = vrot.slane %v582, %v592
    %v594 = vlaneseq
    %v595 = vshrl.u32 %v594, 7
    %v596 = vsub.s32 0, %v595
    %v597 = vrot.slane %v589, %v596
    %v600 = vmul.f32 %v593, %v251
    %v601 = vmul.f32 %v593, %v256
    %v602 = vmul.f32 %v597, %v261
    %v603 = vmul.f32 %v597, %v266
    %v605 = vsel %vm171, %v600, 0
    %v608 = vsel %vm171, %v601, 0
    %v611 = vsel %vm171, %v602, 0
    %v614 = vsel %vm171, %v603, 0
    %616 = vmatprep.subr.mxu0 0.0
    %617 = vmatpush1.msra.mxu0 %v562
    %618 = vmatprep.subr.mxu0 0.0
    %619 = vmatpush1.msra.mxu0 %v563
    %620 = vmatprep.subr.mxu0 0.0
    %621 = vmatpush1.msra.mxu0 %v564
    %622 = vmatprep.subr.mxu0 0.0
    %623 = vmatpush1.msra.mxu0 %v565
    %624 = vmatprep.subr.mxu0 0.0
    %625 = vmatpush1.msra.mxu0 0.0
    %626 = vmatprep.subr.mxu0 0.0
    %627 = vmatpush1.msra.mxu0 0.0
    %628 = vmatprep.subr.mxu0 0.0
    %629 = vmatpush1.msra.mxu0 0.0
    %630 = vmatprep.subr.mxu0 0.0
    %631 = vmatpush1.msra.mxu0 0.0
    %632 = vmatprep.subr.mxu0 0.0
    %633 = vmatpush1.msra.mxu0 0.0
    %634 = vmatprep.subr.mxu0 0.0
    %635 = vmatpush1.msra.mxu0 0.0
    %636 = vmatprep.subr.mxu0 0.0
    %637 = vmatpush1.msra.mxu0 0.0
    %638 = vmatprep.subr.mxu0 0.0
    %639 = vmatpush1.msra.mxu0 0.0
    %640 = vmatprep.subr.mxu0 0.0
    %641 = vmatpush1.msra.mxu0 0.0
    %642 = vmatprep.subr.mxu0 0.0
    %643 = vmatpush1.msra.mxu0 0.0
    %644 = vmatprep.subr.mxu0 0.0
    %645 = vmatpush1.msra.mxu0 0.0
    %646 = vmatprep.subr.mxu0 0.0
    %647 = vmatpush1.msra.mxu0 0.0
    %648 = vmatprep.subr.mxu0 0.0
    %649 = vmatpush1.msra.mxu0 0.0
    %650 = vmatprep.subr.mxu0 0.0
    %651 = vmatpush1.msra.mxu0 0.0
    %652 = vmatprep.subr.mxu0 0.0
    %653 = vmatpush1.msra.mxu0 0.0
    %654 = vmatprep.subr.mxu0 0.0
    %655 = vmatpush1.msra.mxu0 0.0
    %656 = vmatprep.subr.mxu0 0.0
    %657 = vmatpush1.msra.mxu0 0.0
    %658 = vmatprep.subr.mxu0 0.0
    %659 = vmatpush1.msra.mxu0 0.0
    %660 = vmatprep.subr.mxu0 0.0
    %661 = vmatpush1.msra.mxu0 0.0
    %662 = vmatprep.subr.mxu0 0.0
    %663 = vmatpush1.msra.mxu0 0.0
    %664 = vmatprep.subr.mxu0 0.0
    %665 = vmatpush1.msra.mxu0 0.0
    %666 = vmatprep.subr.mxu0 0.0
    %667 = vmatpush1.msra.mxu0 0.0
    %668 = vmatprep.subr.mxu0 0.0
    %669 = vmatpush1.msra.mxu0 0.0
    %670 = vmatprep.subr.mxu0 0.0
    %671 = vmatpush1.msra.mxu0 0.0
    %672 = vmatprep.subr.mxu0 0.0
    %673 = vmatpush1.msra.mxu0 0.0
    %674 = vmatprep.subr.mxu0 0.0
    %675 = vmatpush1.msra.mxu0 0.0
    %676 = vmatprep.subr.mxu0 0.0
    %677 = vmatpush1.msra.mxu0 0.0
    %678 = vmatprep.subr.mxu0 0.0
    %679 = vmatpush1.msra.mxu0 0.0
    %680 = vmatprep.mubr.f32.mxu0 0.0
    %681 = vmatmul.mubr.f32.gmra.mrb[0].mxu0 %v605
    %v682 = vpop.f32.mrb[0].mxu0
    %v683 = vadd.f32 0.0, %v682
    %v684 = vpop.f32.mrb[0].mxu0
    %685 = vmatprep.mubr.f32.mxu0 0.0
    %686 = vmatmul.mubr.f32.gmra.mrb[0].mxu0 %v608
    %v687 = vpop.f32.mrb[0].mxu0
    %v688 = vadd.f32 0.0, %v687
    %v689 = vpop.f32.mrb[0].mxu0
    %690 = vmatprep.mubr.f32.mxu0 0.0
    %691 = vmatmul.mubr.f32.gmra.mrb[0].mxu0 %v611
    %v692 = vpop.f32.mrb[0].mxu0
    %v693 = vadd.f32 0.0, %v692
    %v694 = vpop.f32.mrb[0].mxu0
    %695 = vmatprep.mubr.f32.mxu0 0.0
    %696 = vmatmul.mubr.f32.gmra.mrb[0].mxu0 %v614
    %v697 = vpop.f32.mrb[0].mxu0
    %v698 = vadd.f32 0.0, %v697
    %v699 = vpop.f32.mrb[0].mxu0
    %700 = vdwg.mxu0
    %v703 = vrot.slane %v532, 7
    %v704 = vsel %vm430, %v703, %v531
    %v706 = vmul.f32 %v501, %v704
    %v708 = vsel %vm171, %v706, 0
    %710 = vmatprep.subr.mxu0 0.0
    %711 = vmatpush1.msra.mxu0 %v562
    %712 = vmatprep.subr.mxu0 0.0
    %713 = vmatpush1.msra.mxu0 %v563
    %714 = vmatprep.subr.mxu0 0.0
    %715 = vmatpush1.msra.mxu0 %v564
    %716 = vmatprep.subr.mxu0 0.0
    %717 = vmatpush1.msra.mxu0 %v565
    %718 = vmatprep.subr.mxu0 0.0
    %719 = vmatpush1.msra.mxu0 0.0
    %720 = vmatprep.subr.mxu0 0.0
    %721 = vmatpush1.msra.mxu0 0.0
    %722 = vmatprep.subr.mxu0 0.0
    %723 = vmatpush1.msra.mxu0 0.0
    %724 = vmatprep.subr.mxu0 0.0
    %725 = vmatpush1.msra.mxu0 0.0
    %726 = vmatprep.subr.mxu0 0.0
    %727 = vmatpush1.msra.mxu0 0.0
    %728 = vmatprep.subr.mxu0 0.0
    %729 = vmatpush1.msra.mxu0 0.0
    %730 = vmatprep.subr.mxu0 0.0
    %731 = vmatpush1.msra.mxu0 0.0
    %732 = vmatprep.subr.mxu0 0.0
    %733 = vmatpush1.msra.mxu0 0.0
    %734 = vmatprep.subr.mxu0 0.0
    %735 = vmatpush1.msra.mxu0 0.0
    %736 = vmatprep.subr.mxu0 0.0
    %737 = vmatpush1.msra.mxu0 0.0
    %738 = vmatprep.subr.mxu0 0.0
    %739 = vmatpush1.msra.mxu0 0.0
    %740 = vmatprep.subr.mxu0 0.0
    %741 = vmatpush1.msra.mxu0 0.0
    %742 = vmatprep.subr.mxu0 0.0
    %743 = vmatpush1.msra.mxu0 0.0
    %744 = vmatprep.subr.mxu0 0.0
    %745 = vmatpush1.msra.mxu0 0.0
    %746 = vmatprep.subr.mxu0 0.0
    %747 = vmatpush1.msra.mxu0 0.0
    %748 = vmatprep.subr.mxu0 0.0
    %749 = vmatpush1.msra.mxu0 0.0
    %750 = vmatprep.subr.mxu0 0.0
    %751 = vmatpush1.msra.mxu0 0.0
    %752 = vmatprep.subr.mxu0 0.0
    %753 = vmatpush1.msra.mxu0 0.0
    %754 = vmatprep.subr.mxu0 0.0
    %755 = vmatpush1.msra.mxu0 0.0
    %756 = vmatprep.subr.mxu0 0.0
    %757 = vmatpush1.msra.mxu0 0.0
    %758 = vmatprep.subr.mxu0 0.0
    %759 = vmatpush1.msra.mxu0 0.0
    %760 = vmatprep.subr.mxu0 0.0
    %761 = vmatpush1.msra.mxu0 0.0
    %762 = vmatprep.subr.mxu0 0.0
    %763 = vmatpush1.msra.mxu0 0.0
    %764 = vmatprep.subr.mxu0 0.0
    %765 = vmatpush1.msra.mxu0 0.0
    %766 = vmatprep.subr.mxu0 0.0
    %767 = vmatpush1.msra.mxu0 0.0
    %768 = vmatprep.subr.mxu0 0.0
    %769 = vmatpush1.msra.mxu0 0.0
    %770 = vmatprep.subr.mxu0 0.0
    %771 = vmatpush1.msra.mxu0 0.0
    %772 = vmatprep.subr.mxu0 0.0
    %773 = vmatpush1.msra.mxu0 0.0
    %774 = vmatprep.mubr.f32.mxu0 0.0
    %775 = vmatmul.mubr.f32.gmra.mrb[0].mxu0 %v708
    %v776 = vpop.f32.mrb[0].mxu0
    %v777 = vadd.f32 0.0, %v776
    %v778 = vpop.f32.mrb[0].mxu0
    %779 = vdwg.mxu0
    %vm780 = vcmask 31744
    %v781 = vsel %vm780, %v683, -inf
    %v782 = vsel %vm780, %v688, -inf
    %v783 = vmax.f32 %v781, %v782
    %v784 = vrot.slane %v783, 4
    %v785 = vmax.f32 %v783, %v784
    %v786 = vrot.slane %v785, 2
    %v787 = vmax.f32 %v785, %v786
    %v788 = vrot.slane %v787, 1
    %v789 = vmax.f32 %v787, %v788
    %v790 = vsel %vm780, %v693, -inf
    %v791 = vsel %vm780, %v698, -inf
    %v792 = vmax.f32 %v790, %v791
    %v793 = vrot.slane %v792, 4
    %v794 = vmax.f32 %v792, %v793
    %v795 = vrot.slane %v794, 2
    %v796 = vmax.f32 %v794, %v795
    %v797 = vrot.slane %v796, 1
    %v798 = vmax.f32 %v796, %v797
    %v800 = vrot.slane %v777, 1
    %v803 = vmax.f32 %v789, %v777
    %v804 = vmax.f32 %v798, %v800
    %v805 = vlaneseq
    %v806 = vshrl.u32 %v805, 7
    %v807 = vsub.s32 0, %v806
    %v808 = vrot.slane %v803, %v807
    %v809 = vlaneseq
    %v810 = vshrl.u32 %v809, 7
    %v811 = vsub.s32 0, %v810
    %v812 = vrot.slane %v804, %v811
    %v813 = vsub.f32 %v683, %v808
    %v814 = vsub.f32 %v688, %v808
    %v815 = vsub.f32 %v693, %v812
    %v816 = vsub.f32 %v698, %v812
    %v817 = vmul.f32 %v813, 1.442695
    %v818 = vpow.pop %v817
    %v819 = vmul.f32 %v814, 1.442695
    %v820 = vpow.pop %v819
    %v821 = vmul.f32 %v815, 1.442695
    %v822 = vpow.pop %v821
    %v823 = vmul.f32 %v816, 1.442695
    %v824 = vpow.pop %v823
    %v827 = vrot.slane %v804, 7
    %v828 = vsel %vm430, %v827, %v803
    %v830 = vsub.f32 %v777, %v828
    %v831 = vmul.f32 %v830, 1.442695
    %v832 = vpow.pop %v831
    %v833 = vsel %vm780, %v818, 0.0
    %v834 = vsel %vm780, %v820, 0.0
    %v835 = vadd.f32 %v833, %v834
    %v836 = vrot.slane %v835, 4
    %v837 = vadd.f32 %v835, %v836
    %v838 = vrot.slane %v837, 2
    %v839 = vadd.f32 %v837, %v838
    %v840 = vrot.slane %v839, 1
    %v841 = vadd.f32 %v839, %v840
    %v842 = vsel %vm780, %v822, 0.0
    %v843 = vsel %vm780, %v824, 0.0
    %v844 = vadd.f32 %v842, %v843
    %v845 = vrot.slane %v844, 4
    %v846 = vadd.f32 %v844, %v845
    %v847 = vrot.slane %v846, 2
    %v848 = vadd.f32 %v846, %v847
    %v849 = vrot.slane %v848, 1
    %v850 = vadd.f32 %v848, %v849
    %v853 = vsel %vm430, %v850, %v841
    %v855 = vadd.f32 %v832, %v853
    %v856 = vrcp.pop %v855
    %v857 = vmul.f32 1.0, %v856
    %v859 = vsel %vm780, %v818, 0
    %v862 = vsel %vm780, %v820, 0
    %v865 = vsel %vm780, %v822, 0
    %v868 = vsel %vm780, %v824, 0
    %vm870 = vcmask 1043456
    %v872 = vsel %vm870, %v566, 0
    %874 = vmatprep.subr.mxu0 0.0
    %875 = vmatpush1.msra.mxu0 %v872
    %876 = vmatprep.subr.mxu0 0.0
    %877 = vmatpush1.msra.mxu0 0.0
    %878 = vmatprep.subr.mxu0 0.0
    %879 = vmatpush1.msra.mxu0 0.0
    %880 = vmatprep.subr.mxu0 0.0
    %881 = vmatpush1.msra.mxu0 0.0
    %882 = vmatprep.subr.mxu0 0.0
    %883 = vmatpush1.msra.mxu0 0.0
    %884 = vmatprep.subr.mxu0 0.0
    %885 = vmatpush1.msra.mxu0 0.0
    %886 = vmatprep.subr.mxu0 0.0
    %887 = vmatpush1.msra.mxu0 0.0
    %888 = vmatprep.subr.mxu0 0.0
    %889 = vmatpush1.msra.mxu0 0.0
    %890 = vmatprep.subr.mxu0 0.0
    %891 = vmatpush1.msra.mxu0 0.0
    %892 = vmatprep.subr.mxu0 0.0
    %893 = vmatpush1.msra.mxu0 0.0
    %894 = vmatprep.subr.mxu0 0.0
    %895 = vmatpush1.msra.mxu0 0.0
    %896 = vmatprep.subr.mxu0 0.0
    %897 = vmatpush1.msra.mxu0 0.0
    %898 = vmatprep.subr.mxu0 0.0
    %899 = vmatpush1.msra.mxu0 0.0
    %900 = vmatprep.subr.mxu0 0.0
    %901 = vmatpush1.msra.mxu0 0.0
    %902 = vmatprep.subr.mxu0 0.0
    %903 = vmatpush1.msra.mxu0 0.0
    %904 = vmatprep.subr.mxu0 0.0
    %905 = vmatpush1.msra.mxu0 0.0
    %906 = vmatprep.subr.mxu0 0.0
    %907 = vmatpush1.msra.mxu0 0.0
    %908 = vmatprep.subr.mxu0 0.0
    %909 = vmatpush1.msra.mxu0 0.0
    %910 = vmatprep.subr.mxu0 0.0
    %911 = vmatpush1.msra.mxu0 0.0
    %912 = vmatprep.subr.mxu0 0.0
    %913 = vmatpush1.msra.mxu0 0.0
    %914 = vmatprep.subr.mxu0 0.0
    %915 = vmatpush1.msra.mxu0 0.0
    %916 = vmatprep.subr.mxu0 0.0
    %917 = vmatpush1.msra.mxu0 0.0
    %918 = vmatprep.subr.mxu0 0.0
    %919 = vmatpush1.msra.mxu0 0.0
    %920 = vmatprep.subr.mxu0 0.0
    %921 = vmatpush1.msra.mxu0 0.0
    %922 = vmatprep.subr.mxu0 0.0
    %923 = vmatpush1.msra.mxu0 0.0
    %924 = vmatprep.subr.mxu0 0.0
    %925 = vmatpush1.msra.mxu0 0.0
    %926 = vmatprep.subr.mxu0 0.0
    %927 = vmatpush1.msra.mxu0 0.0
    %928 = vmatprep.subr.mxu0 0.0
    %929 = vmatpush1.msra.mxu0 0.0
    %930 = vmatprep.subr.mxu0 0.0
    %931 = vmatpush1.msra.mxu0 0.0
    %932 = vmatprep.subr.mxu0 0.0
    %933 = vmatpush1.msra.mxu0 0.0
    %934 = vmatprep.subr.mxu0 0.0
    %935 = vmatpush1.msra.mxu0 0.0
    %936 = vmatprep.subr.mxu0 0.0
    %937 = vmatpush1.msra.mxu0 0.0
    %938 = vmatprep.mubr.f32.mxu0 0.0
    %939 = vmatmul.mubr.f32.gmra.mrb[0].mxu0 %v859
    %v940 = vpop.f32.mrb[0].mxu0
    %v941 = vadd.f32 0.0, %v940
    %v942 = vpop.f32.mrb[0].mxu0
    %943 = vmatprep.mubr.f32.mxu0 0.0
    %944 = vmatmul.mubr.f32.gmra.mrb[0].mxu0 %v862
    %v945 = vpop.f32.mrb[0].mxu0
    %v946 = vadd.f32 0.0, %v945
    %v947 = vpop.f32.mrb[0].mxu0
    %948 = vmatprep.mubr.f32.mxu0 0.0
    %949 = vmatmul.mubr.f32.gmra.mrb[0].mxu0 %v865
    %v950 = vpop.f32.mrb[0].mxu0
    %v951 = vadd.f32 0.0, %v950
    %v952 = vpop.f32.mrb[0].mxu0
    %953 = vmatprep.mubr.f32.mxu0 0.0
    %954 = vmatmul.mubr.f32.gmra.mrb[0].mxu0 %v868
    %v955 = vpop.f32.mrb[0].mxu0
    %v956 = vadd.f32 0.0, %v955
    %v957 = vpop.f32.mrb[0].mxu0
    %958 = vdwg.mxu0
    %v960 = vsel %vm780, %v832, 0
    %962 = vmatprep.subr.mxu0 0.0
    %963 = vmatpush1.msra.mxu0 %v872
    %964 = vmatprep.subr.mxu0 0.0
    %965 = vmatpush1.msra.mxu0 0.0
    %966 = vmatprep.subr.mxu0 0.0
    %967 = vmatpush1.msra.mxu0 0.0
    %968 = vmatprep.subr.mxu0 0.0
    %969 = vmatpush1.msra.mxu0 0.0
    %970 = vmatprep.subr.mxu0 0.0
    %971 = vmatpush1.msra.mxu0 0.0
    %972 = vmatprep.subr.mxu0 0.0
    %973 = vmatpush1.msra.mxu0 0.0
    %974 = vmatprep.subr.mxu0 0.0
    %975 = vmatpush1.msra.mxu0 0.0
    %976 = vmatprep.subr.mxu0 0.0
    %977 = vmatpush1.msra.mxu0 0.0
    %978 = vmatprep.subr.mxu0 0.0
    %979 = vmatpush1.msra.mxu0 0.0
    %980 = vmatprep.subr.mxu0 0.0
    %981 = vmatpush1.msra.mxu0 0.0
    %982 = vmatprep.subr.mxu0 0.0
    %983 = vmatpush1.msra.mxu0 0.0
    %984 = vmatprep.subr.mxu0 0.0
    %985 = vmatpush1.msra.mxu0 0.0
    %986 = vmatprep.subr.mxu0 0.0
    %987 = vmatpush1.msra.mxu0 0.0
    %988 = vmatprep.subr.mxu0 0.0
    %989 = vmatpush1.msra.mxu0 0.0
    %990 = vmatprep.subr.mxu0 0.0
    %991 = vmatpush1.msra.mxu0 0.0
    %992 = vmatprep.subr.mxu0 0.0
    %993 = vmatpush1.msra.mxu0 0.0
    %994 = vmatprep.subr.mxu0 0.0
    %995 = vmatpush1.msra.mxu0 0.0
    %996 = vmatprep.subr.mxu0 0.0
    %997 = vmatpush1.msra.mxu0 0.0
    %998 = vmatprep.subr.mxu0 0.0
    %999 = vmatpush1.msra.mxu0 0.0
    %1000 = vmatprep.subr.mxu0 0.0
    %1001 = vmatpush1.msra.mxu0 0.0
    %1002 = vmatprep.subr.mxu0 0.0
    %1003 = vmatpush1.msra.mxu0 0.0
    %1004 = vmatprep.subr.mxu0 0.0
    %1005 = vmatpush1.msra.mxu0 0.0
    %1006 = vmatprep.subr.mxu0 0.0
    %1007 = vmatpush1.msra.mxu0 0.0
    %1008 = vmatprep.subr.mxu0 0.0
    %1009 = vmatpush1.msra.mxu0 0.0
    %1010 = vmatprep.subr.mxu0 0.0
    %1011 = vmatpush1.msra.mxu0 0.0
    %1012 = vmatprep.subr.mxu0 0.0
    %1013 = vmatpush1.msra.mxu0 0.0
    %1014 = vmatprep.subr.mxu0 0.0
    %1015 = vmatpush1.msra.mxu0 0.0
    %1016 = vmatprep.subr.mxu0 0.0
    %1017 = vmatpush1.msra.mxu0 0.0
    %1018 = vmatprep.subr.mxu0 0.0
    %1019 = vmatpush1.msra.mxu0 0.0
    %1020 = vmatprep.subr.mxu0 0.0
    %1021 = vmatpush1.msra.mxu0 0.0
    %1022 = vmatprep.subr.mxu0 0.0
    %1023 = vmatpush1.msra.mxu0 0.0
    %1024 = vmatprep.subr.mxu0 0.0
    %1025 = vmatpush1.msra.mxu0 0.0
    %1026 = vmatprep.mubr.f32.mxu0 0.0
    %1027 = vmatmul.mubr.f32.gmra.mrb[0].mxu0 %v960
    %v1028 = vpop.f32.mrb[0].mxu0
    %v1029 = vadd.f32 0.0, %v1028
    %v1030 = vpop.f32.mrb[0].mxu0
    %1031 = vdwg.mxu0
    %v1033 = vsel %vm780, %v857, 0
    %1035 = vmatprep.subr.mxu0 0.0
    %1036 = vmatpush1.msra.mxu0 %v872
    %1037 = vmatprep.subr.mxu0 0.0
    %1038 = vmatpush1.msra.mxu0 0.0
    %1039 = vmatprep.subr.mxu0 0.0
    %1040 = vmatpush1.msra.mxu0 0.0
    %1041 = vmatprep.subr.mxu0 0.0
    %1042 = vmatpush1.msra.mxu0 0.0
    %1043 = vmatprep.subr.mxu0 0.0
    %1044 = vmatpush1.msra.mxu0 0.0
    %1045 = vmatprep.subr.mxu0 0.0
    %1046 = vmatpush1.msra.mxu0 0.0
    %1047 = vmatprep.subr.mxu0 0.0
    %1048 = vmatpush1.msra.mxu0 0.0
    %1049 = vmatprep.subr.mxu0 0.0
    %1050 = vmatpush1.msra.mxu0 0.0
    %1051 = vmatprep.subr.mxu0 0.0
    %1052 = vmatpush1.msra.mxu0 0.0
    %1053 = vmatprep.subr.mxu0 0.0
    %1054 = vmatpush1.msra.mxu0 0.0
    %1055 = vmatprep.subr.mxu0 0.0
    %1056 = vmatpush1.msra.mxu0 0.0
    %1057 = vmatprep.subr.mxu0 0.0
    %1058 = vmatpush1.msra.mxu0 0.0
    %1059 = vmatprep.subr.mxu0 0.0
    %1060 = vmatpush1.msra.mxu0 0.0
    %1061 = vmatprep.subr.mxu0 0.0
    %1062 = vmatpush1.msra.mxu0 0.0
    %1063 = vmatprep.subr.mxu0 0.0
    %1064 = vmatpush1.msra.mxu0 0.0
    %1065 = vmatprep.subr.mxu0 0.0
    %1066 = vmatpush1.msra.mxu0 0.0
    %1067 = vmatprep.subr.mxu0 0.0
    %1068 = vmatpush1.msra.mxu0 0.0
    %1069 = vmatprep.subr.mxu0 0.0
    %1070 = vmatpush1.msra.mxu0 0.0
    %1071 = vmatprep.subr.mxu0 0.0
    %1072 = vmatpush1.msra.mxu0 0.0
    %1073 = vmatprep.subr.mxu0 0.0
    %1074 = vmatpush1.msra.mxu0 0.0
    %1075 = vmatprep.subr.mxu0 0.0
    %1076 = vmatpush1.msra.mxu0 0.0
    %1077 = vmatprep.subr.mxu0 0.0
    %1078 = vmatpush1.msra.mxu0 0.0
    %1079 = vmatprep.subr.mxu0 0.0
    %1080 = vmatpush1.msra.mxu0 0.0
    %1081 = vmatprep.subr.mxu0 0.0
    %1082 = vmatpush1.msra.mxu0 0.0
    %1083 = vmatprep.subr.mxu0 0.0
    %1084 = vmatpush1.msra.mxu0 0.0
    %1085 = vmatprep.subr.mxu0 0.0
    %1086 = vmatpush1.msra.mxu0 0.0
    %1087 = vmatprep.subr.mxu0 0.0
    %1088 = vmatpush1.msra.mxu0 0.0
    %1089 = vmatprep.subr.mxu0 0.0
    %1090 = vmatpush1.msra.mxu0 0.0
    %1091 = vmatprep.subr.mxu0 0.0
    %1092 = vmatpush1.msra.mxu0 0.0
    %1093 = vmatprep.subr.mxu0 0.0
    %1094 = vmatpush1.msra.mxu0 0.0
    %1095 = vmatprep.subr.mxu0 0.0
    %1096 = vmatpush1.msra.mxu0 0.0
    %1097 = vmatprep.subr.mxu0 0.0
    %1098 = vmatpush1.msra.mxu0 0.0
    %1099 = vmatprep.mubr.f32.mxu0 0.0
    %1100 = vmatmul.mubr.f32.gmra.mrb[0].mxu0 %v1033
    %v1101 = vpop.f32.mrb[0].mxu0
    %v1102 = vadd.f32 0.0, %v1101
    %v1103 = vpop.f32.mrb[0].mxu0
    %1104 = vdwg.mxu0
    %v1105 = vmul.f32 %v941, %v347
    %v1106 = vmul.f32 %v946, %v352
    %v1107 = vmul.f32 %v951, %v357
    %v1108 = vmul.f32 %v956, %v362
    %v1109 = vsel %vm171, %v1105, 0.0
    %v1110 = vsel %vm171, %v1106, 0.0
    %v1111 = vadd.f32 %v1109, %v1110
    %v1112 = vrot.slane %v1111, 4
    %v1113 = vadd.f32 %v1111, %v1112
    %v1114 = vrot.slane %v1113, 2
    %v1115 = vadd.f32 %v1113, %v1114
    %v1116 = vrot.slane %v1115, 1
    %v1117 = vadd.f32 %v1115, %v1116
    %v1118 = vsel %vm171, %v1107, 0.0
    %v1119 = vsel %vm171, %v1108, 0.0
    %v1120 = vadd.f32 %v1118, %v1119
    %v1121 = vrot.slane %v1120, 4
    %v1122 = vadd.f32 %v1120, %v1121
    %v1123 = vrot.slane %v1122, 2
    %v1124 = vadd.f32 %v1122, %v1123
    %v1125 = vrot.slane %v1124, 1
    %v1126 = vadd.f32 %v1124, %v1125
    %v1129 = vrot.slane %v561, 7
    %v1130 = vsel %vm430, %v1129, %v560
    %v1132 = vmul.f32 %v1029, %v1130
    %v1134 = vrot.slane %v1132, 1
    %v1137 = vadd.f32 %v1117, %v1132
    %v1138 = vadd.f32 %v1126, %v1134
    %v1140 = vrot.slane %v1102, 1
    %v1143 = vmul.f32 %v1137, %v1102
    %v1144 = vmul.f32 %v1138, %v1140
    %v1145 = vld [vmem:[%s12] sm:$0xff]
    %v1146 = vld [vmem:[%s12 + $0x8] sm:$0xff]
    %v1147 = vld [vmem:[%s12 + $0x10] sm:$0xff]
    %v1148 = vld [vmem:[%s12 + $0x18] sm:$0xff]
    %v1149 = vld [vmem:[%s13] sm:$0x1]
    %v1151 = vlaneseq
    %v1152 = vshrl.u32 %v1151, 7
    %v1153 = vsub.s32 0, %v1152
    %v1154 = vrot.slane %v1149, %v1153
    %v1158 = vrot.slane %v1144, 7
    %v1159 = vsel %vm430, %v1158, %v1143
    %v1160 = vsel %vm171, %v1159, 0
    %1162 = vmatprep.subr.mxu0 0.0
    %1163 = vmatpush1.msra.mxu0 %v1145
    %1164 = vmatprep.subr.mxu0 0.0
    %1165 = vmatpush1.msra.mxu0 %v1146
    %1166 = vmatprep.subr.mxu0 0.0
    %1167 = vmatpush1.msra.mxu0 %v1147
    %1168 = vmatprep.subr.mxu0 0.0
    %1169 = vmatpush1.msra.mxu0 %v1148
    %1170 = vmatprep.subr.mxu0 0.0
    %1171 = vmatpush1.msra.mxu0 0.0
    %1172 = vmatprep.subr.mxu0 0.0
    %1173 = vmatpush1.msra.mxu0 0.0
    %1174 = vmatprep.subr.mxu0 0.0
    %1175 = vmatpush1.msra.mxu0 0.0
    %1176 = vmatprep.subr.mxu0 0.0
    %1177 = vmatpush1.msra.mxu0 0.0
    %1178 = vmatprep.subr.mxu0 0.0
    %1179 = vmatpush1.msra.mxu0 0.0
    %1180 = vmatprep.subr.mxu0 0.0
    %1181 = vmatpush1.msra.mxu0 0.0
    %1182 = vmatprep.subr.mxu0 0.0
    %1183 = vmatpush1.msra.mxu0 0.0
    %1184 = vmatprep.subr.mxu0 0.0
    %1185 = vmatpush1.msra.mxu0 0.0
    %1186 = vmatprep.subr.mxu0 0.0
    %1187 = vmatpush1.msra.mxu0 0.0
    %1188 = vmatprep.subr.mxu0 0.0
    %1189 = vmatpush1.msra.mxu0 0.0
    %1190 = vmatprep.subr.mxu0 0.0
    %1191 = vmatpush1.msra.mxu0 0.0
    %1192 = vmatprep.subr.mxu0 0.0
    %1193 = vmatpush1.msra.mxu0 0.0
    %1194 = vmatprep.subr.mxu0 0.0
    %1195 = vmatpush1.msra.mxu0 0.0
    %1196 = vmatprep.subr.mxu0 0.0
    %1197 = vmatpush1.msra.mxu0 0.0
    %1198 = vmatprep.subr.mxu0 0.0
    %1199 = vmatpush1.msra.mxu0 0.0
    %1200 = vmatprep.subr.mxu0 0.0
    %1201 = vmatpush1.msra.mxu0 0.0
    %1202 = vmatprep.subr.mxu0 0.0
    %1203 = vmatpush1.msra.mxu0 0.0
    %1204 = vmatprep.subr.mxu0 0.0
    %1205 = vmatpush1.msra.mxu0 0.0
    %1206 = vmatprep.subr.mxu0 0.0
    %1207 = vmatpush1.msra.mxu0 0.0
    %1208 = vmatprep.subr.mxu0 0.0
    %1209 = vmatpush1.msra.mxu0 0.0
    %1210 = vmatprep.subr.mxu0 0.0
    %1211 = vmatpush1.msra.mxu0 0.0
    %1212 = vmatprep.subr.mxu0 0.0
    %1213 = vmatpush1.msra.mxu0 0.0
    %1214 = vmatprep.subr.mxu0 0.0
    %1215 = vmatpush1.msra.mxu0 0.0
    %1216 = vmatprep.subr.mxu0 0.0
    %1217 = vmatpush1.msra.mxu0 0.0
    %1218 = vmatprep.subr.mxu0 0.0
    %1219 = vmatpush1.msra.mxu0 0.0
    %1220 = vmatprep.subr.mxu0 0.0
    %1221 = vmatpush1.msra.mxu0 0.0
    %1222 = vmatprep.subr.mxu0 0.0
    %1223 = vmatpush1.msra.mxu0 0.0
    %1224 = vmatprep.subr.mxu0 0.0
    %1225 = vmatpush1.msra.mxu0 0.0
    %1226 = vmatprep.mubr.f32.mxu0 0.0
    %1227 = vmatmul.mubr.f32.gmra.mrb[0].mxu0 %v1160
    %v1228 = vpop.f32.mrb[0].mxu0
    %v1229 = vadd.f32 %v1154, %v1228
    %v1230 = vpop.f32.mrb[0].mxu0
    %1231 = vdwg.mxu0
    %vm1232 = vcmask 123904
    %1233 = vst.msk [vmem:[#allocation2] sm:$0x3] %vm1232, %v1229
    // Predicated region
    $region58: #{tpu_custom_call.1} parent=1 // pred_check
      _
    $region59: #{tpu_custom_call.1} parent=1 // pred_check_branch
      %1235 = sbr.rel (0) target = $region61
    $region60: #{tpu_custom_call.1} parent=1 // pred_region
      %s1237 = ssub.s32 32, 32
      %1238 = vsyncadd [#allocation3], %s1237
      %s1240 = sshll.u32 [#allocation2], 4
      %s1241 = int_to_ptr.vmem [resolvable:$true] %s1240
      %1243 = dma.vmem_to_hbm [thread:$0]  %s1241, 32, %s14, [#allocation3]
    $region61: #{tpu_custom_call.1} parent=1 // pred_fallthru
      _
    // Predicated region
    $region62: #{tpu_custom_call.1} parent=1 // pred_check
      _
    $region63: #{tpu_custom_call.1} parent=1 // pred_check_branch
      %1245 = sbr.rel (0) target = $region65
    $region64: #{tpu_custom_call.1} parent=1 // pred_region
      %1246 = dma.done [#allocation3], 32
    $region65: #{tpu_custom_call.1} parent=1 // pred_fallthru
      _
    %1247 = vsyncpa [#allocation3], 1

</llo_original>
